<compile_context>
chip_gen: v6e
topology: v6e:2x2x1
jax: 0.10.0
libtpu: 0.0.40
codegen_flags: <defaults>
</compile_context>

<pallas_src>
import functools
import math

import numpy as np
import jax
import jax.numpy as jnp
from jax.experimental import pallas as pl
from jax.experimental.pallas import tpu as pltpu


# ----------------------------------------------------------------------------
# Pallas kernels
# ----------------------------------------------------------------------------
def _epilogue(acc, s, c, res, act):
    y = acc * s + c
    if res is not None:
        y = y + res
    if act == "relu":
        y = jnp.maximum(y, 0.0)
    elif act == "elu":
        y = jnp.where(y > 0.0, y, jnp.expm1(y))
    return y


def _gemm_single_kernel(*refs, act, has_res):
    """o = act((a @ b) * scale + bias [+ residual]); single K block."""
    if has_res:
        a_ref, b_ref, s_ref, c_ref, r_ref, o_ref = refs
        res = r_ref[...]
    else:
        a_ref, b_ref, s_ref, c_ref, o_ref = refs
        res = None
    acc = jnp.dot(a_ref[...], b_ref[...], preferred_element_type=jnp.float32)
    o_ref[...] = _epilogue(acc, s_ref[...], c_ref[...], res, act)


def _gemm_ktiled_kernel(*refs, act, has_res):
    """Same as above, K-tiled with a VMEM f32 accumulator (grid axis 1 = K)."""
    if has_res:
        a_ref, b_ref, s_ref, c_ref, r_ref, o_ref, acc_ref = refs
    else:
        a_ref, b_ref, s_ref, c_ref, o_ref, acc_ref = refs
        r_ref = None

    @pl.when(pl.program_id(1) == 0)
    def _():
        acc_ref[...] = jnp.zeros_like(acc_ref)

    acc_ref[...] += jnp.dot(a_ref[...], b_ref[...],
                            preferred_element_type=jnp.float32)

    @pl.when(pl.program_id(1) == pl.num_programs(1) - 1)
    def _():
        res = r_ref[...] if has_res else None
        o_ref[...] = _epilogue(acc_ref[...], s_ref[...], c_ref[...], res, act)


def _max9_kernel(x_ref, o_ref):
    o_ref[...] = jnp.max(x_ref[...], axis=0)


def _gap_fc_kernel(x_ref, w_ref, b_ref, feat_ref, hr_ref):
    """Global average pool over spatial dim + Linear(C -> 1), on the VPU."""
    pooled = jnp.mean(x_ref[...], axis=1)                       # (B, C)
    feat_ref[...] = pooled
    hr_ref[...] = jnp.sum(pooled * w_ref[...], axis=-1, keepdims=True) + b_ref[...]


# ----------------------------------------------------------------------------
# Pallas wrappers
# ----------------------------------------------------------------------------
def _round_up(x, m):
    return ((x + m - 1) // m) * m


def matmul_affine_act(a, b_mat, scale, bias, act="none", residual=None):
    """(M,K)@(K,N) bf16 MXU GEMM, f32 accumulate, fused per-column affine,
    optional fused residual add, fused ReLU/ELU."""
    M, K = a.shape
    Kb, N = b_mat.shape
    assert K == Kb
    has_res = residual is not None

    a = a.astype(jnp.bfloat16)
    b_mat = b_mat.astype(jnp.bfloat16)
    s2 = scale.astype(jnp.float32).reshape(1, N)
    c2 = bias.astype(jnp.float32).reshape(1, N)

    # M tiling: full-extent block (no padding) when it fits; 512-row tiles otherwise.
    if M <= 1024:
        TM, Mp = M, M
    else:
        TM = 512
        Mp = _round_up(M, TM)
    if Mp != M:
        a = jnp.pad(a, ((0, Mp - M), (0, 0)))
    if has_res:
        r2 = residual.astype(jnp.float32)
        if Mp != M:
            r2 = jnp.pad(r2, ((0, Mp - M), (0, 0)))

    # K tiling only for the deep GEMMs (layer4: K = 4608).
    if K > 2048 and K % 512 == 0:
        TK = 512
    else:
        TK = K
    nk = K // TK
    nm = Mp // TM

    in_specs = [
        pl.BlockSpec((TM, TK), lambda i, k: (i, k)),
        pl.BlockSpec((TK, N), lambda i, k: (k, 0)),
        pl.BlockSpec((1, N), lambda i, k: (0, 0)),
        pl.BlockSpec((1, N), lambda i, k: (0, 0)),
    ]
    inputs = [a, b_mat, s2, c2]
    if has_res:
        in_specs.append(pl.BlockSpec((TM, N), lambda i, k: (i, 0)))
        inputs.append(r2)

    # VMEM budget derived from actual tile sizes; capped below v7x's 64 MiB physical VMEM.
    est = (2 * (TM * TK + TK * N) * 2            # double-buffered bf16 operands
           + 2 * 2 * N * 4                       # scale / bias
           + 3 * TM * N * 4                      # output (double-buffered) + accumulator
           + (2 * TM * N * 4 if has_res else 0))
    vmem_limit = int(min(4 * est + (16 << 20), 48 << 20))

    if nk == 1:
        kern = functools.partial(_gemm_single_kernel, act=act, has_res=has_res)
        scratch = []
    else:
        kern = functools.partial(_gemm_ktiled_kernel, act=act, has_res=has_res)
        scratch = [pltpu.VMEM((TM, N), jnp.float32)]

    out = pl.pallas_call(
        kern,
        out_shape=jax.ShapeDtypeStruct((Mp, N), jnp.float32),
        grid=(nm, nk),
        in_specs=in_specs,
        out_specs=pl.BlockSpec((TM, N), lambda i, k: (i, 0)),
        scratch_shapes=scratch,
        compiler_params=pltpu.CompilerParams(
            dimension_semantics=("parallel", "arbitrary"),
            vmem_limit_bytes=vmem_limit),
    )(*inputs)
    if Mp != M:
        out = out[:M]
    return out


def maxpool_3x3_s2_p1_nhwc(x):
    """MaxPool2d(kernel=3, stride=2, padding=1) in NHWC; lane-dense 9-way max."""
    B, H, W, C = x.shape
    Ho = (H + 2 - 3) // 2 + 1
    Wo = (W + 2 - 3) // 2 + 1
    xp = jnp.pad(x, ((0, 0), (1, 1), (1, 1), (0, 0)), constant_values=float("-inf"))
    slices = [xp[:, i:i + 2 * (Ho - 1) + 1:2, j:j + 2 * (Wo - 1) + 1:2, :]
              for i in range(3) for j in range(3)]
    stk = jnp.stack(slices, axis=0).reshape(9, B * Ho, Wo * C)   # lane-dense last dim
    out = pl.pallas_call(
        _max9_kernel,
        out_shape=jax.ShapeDtypeStruct((B * Ho, Wo * C), jnp.float32),
    )(stk)
    return out.reshape(B, Ho, Wo, C)


def global_pool_fc(h, fc_w, fc_b):
    """AdaptiveAvgPool2d((1,1)) + Linear(512 -> 1) fused in one small VPU kernel."""
    B, H, W, C = h.shape
    x = h.reshape(B, H * W, C).astype(jnp.float32)
    feat_out, hr = pl.pallas_call(
        _gap_fc_kernel,
        out_shape=(jax.ShapeDtypeStruct((B, C), jnp.float32),
                   jax.ShapeDtypeStruct((B, 1), jnp.float32)),
    )(x, fc_w, fc_b)
    return feat_out, hr


# ----------------------------------------------------------------------------
# Glue: im2col (NHWC), adaptive-pool matrices
# ----------------------------------------------------------------------------
def _im2col_nhwc(x, kh, kw, stride, padding):
    B, H, W, C = x.shape
    Ho = (H + 2 * padding - kh) // stride + 1
    Wo = (W + 2 * padding - kw) // stride + 1
    if padding:
        x = jnp.pad(x, ((0, 0), (padding, padding), (padding, padding), (0, 0)))
    cols = [x[:, i:i + stride * (Ho - 1) + 1:stride,
               j:j + stride * (Wo - 1) + 1:stride, :]
            for i in range(kh) for j in range(kw)]
    patches = jnp.stack(cols, axis=3)                  # (B, Ho, Wo, kh*kw, C)
    return patches.reshape(B * Ho * Wo, kh * kw * C), Ho, Wo


def _adaptive_pool_matrix(n_in, n_out):
    """Column-averaging matrix matching torch AdaptiveAvgPool bin rule."""
    P = np.zeros((n_in, n_out), np.float32)
    for o in range(n_out):
        s = (o * n_in) // n_out
        e = int(math.ceil((o + 1) * n_in / n_out))
        P[s:e, o] = 1.0 / (e - s)
    return jnp.asarray(P)


# ----------------------------------------------------------------------------
# Parameters (deterministic synthetic) + one-time GEMM-ready preparation
# ----------------------------------------------------------------------------
class _ParamGen:
    def __init__(self, seed):
        self._key = jax.random.PRNGKey(seed)

    def _next(self):
        self._key, sub = jax.random.split(self._key)
        return sub

    def normal(self, shape, std=0.05):
        return std * jax.random.normal(self._next(), shape, jnp.float32)

    def bn(self, c):
        return dict(
            gamma=1.0 + 0.1 * jax.random.normal(self._next(), (c,), jnp.float32),
            beta=0.1 * jax.random.normal(self._next(), (c,), jnp.float32),
            mean=0.1 * jax.random.normal(self._next(), (c,), jnp.float32),
            var=1.0 + 0.5 * jax.random.uniform(self._next(), (c,), jnp.float32),
        )


def init_params(seed=42):
    pg = _ParamGen(seed)
    p = {}
    p["conv1"] = pg.normal((64, 6, 7, 7))
    p["bn1"] = pg.bn(64)

    def make_layer(cin, cout, blocks, stride):
        layer = []
        for bidx in range(blocks):
            s = stride if bidx == 0 else 1
            in_ch = cin if bidx == 0 else cout
            blk = {
                "conv1": pg.normal((cout, in_ch, 3, 3)),
                "bn1": pg.bn(cout),
                "conv2": pg.normal((cout, cout, 3, 3)),
                "bn2": pg.bn(cout),
                "stride": s,
            }
            if s != 1 or in_ch != cout:
                blk["down_conv"] = pg.normal((cout, in_ch, 1, 1))
                blk["down_bn"] = pg.bn(cout)
            layer.append(blk)
        return layer

    p["layer1"] = make_layer(64, 64, 2, 1)
    p["layer2"] = make_layer(64, 128, 2, 2)
    p["layer3"] = make_layer(128, 256, 2, 2)
    p["layer4"] = make_layer(256, 512, 2, 2)
    p["fc_w"] = pg.normal((1, 512))            # Linear(512 -> num_classes=1)
    p["fc_b"] = pg.normal((1,))
    # upsample1 / upsample2 (ConvTranspose weights are (Cin, Cout, 1, K))
    p["up1_w"] = pg.normal((256, 64, 1, 3))
    p["up1_b"] = pg.normal((64,))
    p["up1_bn"] = pg.bn(64)
    p["up2_w"] = pg.normal((64, 32, 1, 5))
    p["up2_b"] = pg.normal((32,))
    p["up2_bn"] = pg.bn(32)
    p["ecg_w"] = pg.normal((1, 32, 1, 1))
    p["ecg_b"] = pg.normal((1,))
    return p


def _bn_fold(bn, eps=1e-5):
    s = bn["gamma"] / jnp.sqrt(bn["var"] + eps)
    return s, bn["beta"] - s * bn["mean"]


def _conv_wmat(w):
    """(Cout, Cin, KH, KW) -> (KH*KW*Cin, Cout) bf16 GEMM weight (matches NHWC im2col)."""
    cout = w.shape[0]
    return jnp.transpose(w, (2, 3, 1, 0)).reshape(-1, cout).astype(jnp.bfloat16)


def prepare_params(p, video_length):
    """Hoist all weight reshapes / BN folding / bf16 casts out of the forward path."""
    q = {}
    s, b = _bn_fold(p["bn1"])
    q["stem"] = dict(w=_conv_wmat(p["conv1"]), s=s, b=b)
    for name in ("layer1", "layer2", "layer3", "layer4"):
        blocks = []
        for blk in p[name]:
            s1, b1 = _bn_fold(blk["bn1"])
            s2, b2 = _bn_fold(blk["bn2"])
            nb = dict(w1=_conv_wmat(blk["conv1"]), s1=s1, b1=b1,
                      w2=_conv_wmat(blk["conv2"]), s2=s2, b2=b2,
                      stride=blk["stride"])
            if "down_conv" in blk:
                sd, bd = _bn_fold(blk["down_bn"])
                nb.update(wd=_conv_wmat(blk["down_conv"]), sd=sd, bd=bd)
            blocks.append(nb)
        q[name] = blocks
    q["fc_w"] = p["fc_w"].astype(jnp.float32)                     # (1, 512)
    q["fc_b"] = p["fc_b"].reshape(1, 1).astype(jnp.float32)
    # ConvTranspose2d([1,K], stride [1,K]) + BN + ELU : stride==kernel -> pure GEMM.
    for name, K in (("up1", 3), ("up2", 5)):
        w, cb, bn = p[name + "_w"], p[name + "_b"], p[name + "_bn"]
        cin, cout = w.shape[0], w.shape[1]
        s, sh = _bn_fold(bn)
        q[name] = dict(w=w.reshape(cin, cout * K).astype(jnp.bfloat16),
                       s=jnp.repeat(s, K),
                       b=jnp.repeat(s * cb + sh, K))
    # poolspa (AdaptiveAvgPool2d((1, L)) over 150 samples) fused with the 1x1 ecg conv.
    Q = _adaptive_pool_matrix(150, video_length)                  # (150, L)
    wv = p["ecg_w"].reshape(32)
    q["ecg"] = dict(
        w=(wv[:, None, None] * Q[None, :, :]).reshape(32 * 150, video_length)
          .astype(jnp.bfloat16),
        s=jnp.ones((video_length,), jnp.float32),
        b=jnp.broadcast_to(p["ecg_b"].astype(jnp.float32), (video_length,)))
    return q


# ----------------------------------------------------------------------------
# Forward pass
# ----------------------------------------------------------------------------
def _basic_block(x, blk):
    B, H, W, C = x.shape
    stride = blk["stride"]
    cout = blk["w1"].shape[1]
    # conv1 + BN + ReLU
    p1, Ho, Wo = _im2col_nhwc(x, 3, 3, stride, 1)
    out = matmul_affine_act(p1, blk["w1"], blk["s1"], blk["b1"], "relu")
    # residual path (identity or 1x1 downsample conv + BN)
    if "wd" in blk:
        pid, _, _ = _im2col_nhwc(x, 1, 1, stride, 0)
        res = matmul_affine_act(pid, blk["wd"], blk["sd"], blk["bd"], "none")
    else:
        res = x.reshape(B * H * W, C)
    # conv2 + BN + residual add + ReLU, all fused in the GEMM epilogue
    p2, _, _ = _im2col_nhwc(out.reshape(B, Ho, Wo, cout), 3, 3, 1, 1)
    y = matmul_affine_act(p2, blk["w2"], blk["s2"], blk["b2"], "relu", residual=res)
    return y.reshape(B, Ho, Wo, cout)


def hr_estimator_forward(prep, x_nchw, video_length=300):
    B = x_nchw.shape[0]
    x = jnp.transpose(x_nchw, (0, 2, 3, 1)).astype(jnp.float32)   # NHWC

    # ---- extractor: modified resnet18 (6-ch stem, fc -> 1) ----
    p, Ho, Wo = _im2col_nhwc(x, 7, 7, 2, 3)
    h = matmul_affine_act(p, prep["stem"]["w"], prep["stem"]["s"],
                          prep["stem"]["b"], "relu")
    h = h.reshape(B, Ho, Wo, 64)
    h = maxpool_3x3_s2_p1_nhwc(h)
    for blk in prep["layer1"]:
        h = _basic_block(h, blk)
    for blk in prep["layer2"]:
        h = _basic_block(h, blk)
    for blk in prep["layer3"]:
        h = _basic_block(h, blk)
    feat = h                                           # (B, H/16, W/16, 256) NHWC
    for blk in prep["layer4"]:
        h = _basic_block(h, blk)

    # AdaptiveAvgPool2d((1,1)) + fc, fused small VPU kernel
    feat_out, hr = global_pool_fc(h, prep["fc_w"], prep["fc_b"])

    # ---- rPPG (ecg) head ----
    _, H3, W3, C3 = feat.shape
    a = jnp.transpose(feat, (0, 3, 1, 2)).reshape(B * C3, H3 * W3)
    Pw = _adaptive_pool_matrix(W3, 10)
    Q = jnp.tile(Pw, (H3, 1)) / float(H3)              # feature_pool (1, 10)
    pooled = matmul_affine_act(a, Q, jnp.ones((10,), jnp.float32),
                               jnp.zeros((10,), jnp.float32), "none")   # (B*256, 10)

    a1 = pooled.reshape(B, C3, 10).transpose(0, 2, 1).reshape(B * 10, C3)
    y1 = matmul_affine_act(a1, prep["up1"]["w"], prep["up1"]["s"],
                           prep["up1"]["b"], "elu")                     # (B*10, 64*3)

    a2 = y1.reshape(B, 10, 64, 3).transpose(0, 1, 3, 2).reshape(B * 30, 64)
    y2 = matmul_affine_act(a2, prep["up2"]["w"], prep["up2"]["s"],
                           prep["up2"]["b"], "elu")                     # (B*30, 32*5)

    # poolspa (1, L) + 1x1 ecg conv, fused into one GEMM
    a3 = y2.reshape(B, 30, 32, 5).transpose(0, 2, 1, 3).reshape(B, 32 * 150)
    ecg = matmul_affine_act(a3, prep["ecg"]["w"], prep["ecg"]["s"],
                            prep["ecg"]["b"], "none")                   # (B, L)
    return hr, ecg, feat_out


# ----------------------------------------------------------------------------
if __name__ == "__main__":
    VIDEO_LENGTH = 300
    B, C, H, W = 2, 6, 32, 64                 # small STmap-like input (NCHW, 6 channels)
    x = jax.random.normal(jax.random.PRNGKey(0), (B, C, H, W), jnp.float32)

    params = init_params(seed=42)
    prep = prepare_params(params, VIDEO_LENGTH)   # weight transforms hoisted (run once)

    hr, ecg, feat_out = hr_estimator_forward(prep, x, video_length=VIDEO_LENGTH)
    jax.block_until_ready((hr, ecg, feat_out))

    assert hr.shape == (B, 1)
    assert ecg.shape == (B, VIDEO_LENGTH)
    assert feat_out.shape == (B, 512)
    assert jnp.all(jnp.isfinite(hr)) and jnp.all(jnp.isfinite(ecg)) and jnp.all(jnp.isfinite(feat_out))
    print("KERNEL_OK")
</pallas_src>

<mosaic_0001>
module attributes {stable_mosaic.version = 11 : i64} {
  func.func @_gemm_single_kernel(%arg0: i32, %arg1: i32, %arg2: memref<1024x294xbf16, #tpu.memory_space<vmem>>, %arg3: memref<294x64xbf16, #tpu.memory_space<vmem>>, %arg4: memref<1x64xf32, #tpu.memory_space<vmem>>, %arg5: memref<1x64xf32, #tpu.memory_space<vmem>>, %arg6: memref<1024x64xf32, #tpu.memory_space<vmem>>) attributes {dimension_semantics = [#tpu.dimension_semantics<parallel>, #tpu.dimension_semantics<arbitrary>], iteration_bounds = array<i64: 1, 1>, scalar_prefetch = 0 : i64, scratch_operands = 0 : i64, tpu.core_type = #tpu.core_type<tc>, window_params = [{transform_indices = @transform_0, window_bounds = array<i64: 1024, 294>}, {transform_indices = @transform_1, window_bounds = array<i64: 294, 64>}, {pipeline_mode = #tpu.pipeline_mode<synchronous>, transform_indices = @transform_2, window_bounds = array<i64: 1, 64>}, {pipeline_mode = #tpu.pipeline_mode<synchronous>, transform_indices = @transform_3, window_bounds = array<i64: 1, 64>}, {transform_indices = @transform_4, window_bounds = array<i64: 1024, 64>}]} {
    %c0 = arith.constant 0 : index
    %c0_0 = arith.constant 0 : index
    %0 = vector.load %arg2[%c0, %c0_0] : memref<1024x294xbf16, #tpu.memory_space<vmem>>, vector<1024x294xbf16>
    %c0_1 = arith.constant 0 : index
    %c0_2 = arith.constant 0 : index
    %1 = vector.load %arg3[%c0_1, %c0_2] : memref<294x64xbf16, #tpu.memory_space<vmem>>, vector<294x64xbf16>
    %cst = arith.constant dense<0.000000e+00> : vector<1024x64xf32>
    %2 = tpu.matmul %0, %1, %cst {dimension_numbers = #tpu.dot_dimension_numbers<[1], [0], [0], [1], [0, 0, 1, 1], [], []>} : vector<1024x294xbf16>, vector<294x64xbf16>, vector<1024x64xf32> -> vector<1024x64xf32>
    %c0_3 = arith.constant 0 : index
    %c0_4 = arith.constant 0 : index
    %3 = vector.load %arg4[%c0_3, %c0_4] : memref<1x64xf32, #tpu.memory_space<vmem>>, vector<1x64xf32>
    %c0_5 = arith.constant 0 : index
    %c0_6 = arith.constant 0 : index
    %4 = vector.load %arg5[%c0_5, %c0_6] : memref<1x64xf32, #tpu.memory_space<vmem>>, vector<1x64xf32>
    %5 = vector.broadcast %3 : vector<1x64xf32> to vector<1024x64xf32>
    %6 = arith.mulf %2, %5 : vector<1024x64xf32>
    %7 = vector.broadcast %4 : vector<1x64xf32> to vector<1024x64xf32>
    %8 = arith.addf %6, %7 : vector<1024x64xf32>
    %cst_7 = arith.constant 0.000000e+00 : f32
    %9 = vector.broadcast %cst_7 : f32 to vector<1024x64xf32>
    %10 = arith.maximumf %8, %9 : vector<1024x64xf32>
    %c0_8 = arith.constant 0 : index
    %c0_9 = arith.constant 0 : index
    %11 = vector.load %arg6[%c0_8, %c0_9] : memref<1024x64xf32, #tpu.memory_space<vmem>>, vector<1024x64xf32>
    tpu.vector_store %arg6[%c0_8, %c0_9], %10 {strides = array<i32>} : memref<1024x64xf32, #tpu.memory_space<vmem>>, vector<1024x64xf32>,
    return
  }
  func.func @transform_0(%arg0: i32, %arg1: i32) -> (i32, i32) {
    %c0_i32 = arith.constant 0 : i32
    return %arg0, %arg1 : i32, i32
  }
  func.func @transform_1(%arg0: i32, %arg1: i32) -> (i32, i32) {
    %c0_i32 = arith.constant 0 : i32
    %c0_i32_0 = arith.constant 0 : i32
    return %arg1, %c0_i32 : i32, i32
  }
  func.func @transform_2(%arg0: i32, %arg1: i32) -> (i32, i32) {
    %c0_i32 = arith.constant 0 : i32
    %c0_i32_0 = arith.constant 0 : i32
    %c0_i32_1 = arith.constant 0 : i32
    return %c0_i32, %c0_i32_0 : i32, i32
  }
  func.func @transform_3(%arg0: i32, %arg1: i32) -> (i32, i32) {
    %c0_i32 = arith.constant 0 : i32
    %c0_i32_0 = arith.constant 0 : i32
    %c0_i32_1 = arith.constant 0 : i32
    return %c0_i32, %c0_i32_0 : i32, i32
  }
  func.func @transform_4(%arg0: i32, %arg1: i32) -> (i32, i32) {
    %c0_i32 = arith.constant 0 : i32
    %c0_i32_0 = arith.constant 0 : i32
    return %arg0, %c0_i32 : i32, i32
  }
}

</mosaic_0001>

<llo_original>
// kernel: tpu_custom_call.1
$region0: #{tpu_custom_call.1}
  #allocation0 [shape = 'u32[]', space=smem, size = 0x4, offset = 0x4, fixed_abs, tag = 'smem constant byte address 0x4 - core index']
  #allocation1 [shape = 'u32[144,128]{1,0:T(1,128)}', space=vmem, size = 0x12000, scoped, tag = 'internal scratch']
  %s0 = inlined_call_operand.vmem [shape: bf16[1024,294], index: 0, kind: input, shape index: {}]
  %s1 = inlined_call_operand.vmem [shape: bf16[294,64], index: 1, kind: input, shape index: {}]
  %s2 = inlined_call_operand.vmem [shape: f32[1,64], index: 2, kind: input, shape index: {}]
  %s3 = inlined_call_operand.vmem [shape: f32[1,64], index: 3, kind: input, shape index: {}]
  %s4 = inlined_call_operand.vmem [shape: f32[1024,64], index: 4, kind: output, shape index: {}]
  %s5 = sld [smem:[#allocation0]]
  $region26: #{tpu_custom_call.1} parent=0
    _
  %s7 = ssub.s32 1, %s5
  %s8 = scalar_select 0, %s7, %s5
  // Predicated region
  $region2: #{tpu_custom_call.1} parent=0 // pred_check
    _
  $region3: #{tpu_custom_call.1} parent=0 // pred_check_branch
    %10 = sbr.rel (0) target = $region5
  $region4: #{tpu_custom_call.1} parent=0 // pred_region
    _
  $region5: #{tpu_custom_call.1} parent=0 // pred_fallthru
    _
  // Predicated region
  $region6: #{tpu_custom_call.1} parent=0 // pred_check
    _
  $region7: #{tpu_custom_call.1} parent=0 // pred_check_branch
    %12 = sbr.rel (0) target = $region9
  $region8: #{tpu_custom_call.1} parent=0 // pred_region
    _
  $region9: #{tpu_custom_call.1} parent=0 // pred_fallthru
    _
  // Predicated region
  $region10: #{tpu_custom_call.1} parent=0 // pred_check
    _
  $region11: #{tpu_custom_call.1} parent=0 // pred_check_branch
    %14 = sbr.rel (0) target = $region13
  $region12: #{tpu_custom_call.1} parent=0 // pred_region
    _
  $region13: #{tpu_custom_call.1} parent=0 // pred_fallthru
    _
  // Predicated region
  $region14: #{tpu_custom_call.1} parent=0 // pred_check
    _
  $region15: #{tpu_custom_call.1} parent=0 // pred_check_branch
    %16 = sbr.rel (0) target = $region17
  $region16: #{tpu_custom_call.1} parent=0 // pred_region
    _
  $region17: #{tpu_custom_call.1} parent=0 // pred_fallthru
    _
  %v18 = vld [vmem:[%s0] sm:$0xff]
  %v19 = vld [vmem:[%s0 + $0x8] sm:$0xf]
  %v20 = vld [vmem:[%s0 + $0xc] sm:$0xff]
  %v21 = vld [vmem:[%s0 + $0x14] sm:$0xf]
  %v22 = vld [vmem:[%s0 + $0x18] sm:$0xff]
  %v23 = vld [vmem:[%s0 + $0x20] sm:$0xf]
  %v24 = vld [vmem:[%s0 + $0x24] sm:$0xff]
  %v25 = vld [vmem:[%s0 + $0x2c] sm:$0xf]
  %v26 = vld [vmem:[%s0 + $0x30] sm:$0xff]
  %v27 = vld [vmem:[%s0 + $0x38] sm:$0xf]
  %v28 = vld [vmem:[%s0 + $0x3c] sm:$0xff]
  %v29 = vld [vmem:[%s0 + $0x44] sm:$0xf]
  %v30 = vld [vmem:[%s0 + $0x48] sm:$0xff]
  %v31 = vld [vmem:[%s0 + $0x50] sm:$0xf]
  %v32 = vld [vmem:[%s0 + $0x54] sm:$0xff]
  %v33 = vld [vmem:[%s0 + $0x5c] sm:$0xf]
  %v34 = vld [vmem:[%s0 + $0x60] sm:$0xff]
  %v35 = vld [vmem:[%s0 + $0x68] sm:$0xf]
  %v36 = vld [vmem:[%s0 + $0x6c] sm:$0xff]
  %v37 = vld [vmem:[%s0 + $0x74] sm:$0xf]
  %v38 = vld [vmem:[%s0 + $0x78] sm:$0xff]
  %v39 = vld [vmem:[%s0 + $0x80] sm:$0xf]
  %v40 = vld [vmem:[%s0 + $0x84] sm:$0xff]
  %v41 = vld [vmem:[%s0 + $0x8c] sm:$0xf]
  %v42 = vld [vmem:[%s0 + $0x90] sm:$0xff]
  %v43 = vld [vmem:[%s0 + $0x98] sm:$0xf]
  %v44 = vld [vmem:[%s0 + $0x9c] sm:$0xff]
  %v45 = vld [vmem:[%s0 + $0xa4] sm:$0xf]
  %v46 = vld [vmem:[%s0 + $0xa8] sm:$0xff]
  %v47 = vld [vmem:[%s0 + $0xb0] sm:$0xf]
  %v48 = vld [vmem:[%s0 + $0xb4] sm:$0xff]
  %v49 = vld [vmem:[%s0 + $0xbc] sm:$0xf]
  %v50 = vld [vmem:[%s0 + $0xc0] sm:$0xff]
  %v51 = vld [vmem:[%s0 + $0xc8] sm:$0xf]
  %v52 = vld [vmem:[%s0 + $0xcc] sm:$0xff]
  %v53 = vld [vmem:[%s0 + $0xd4] sm:$0xf]
  %v54 = vld [vmem:[%s0 + $0xd8] sm:$0xff]
  %v55 = vld [vmem:[%s0 + $0xe0] sm:$0xf]
  %v56 = vld [vmem:[%s0 + $0xe4] sm:$0xff]
  %v57 = vld [vmem:[%s0 + $0xec] sm:$0xf]
  %v58 = vld [vmem:[%s0 + $0xf0] sm:$0xff]
  %v59 = vld [vmem:[%s0 + $0xf8] sm:$0xf]
  %v60 = vld [vmem:[%s0 + $0xfc] sm:$0xff]
  %v61 = vld [vmem:[%s0 + $0x104] sm:$0xf]
  %v62 = vld [vmem:[%s0 + $0x108] sm:$0xff]
  %v63 = vld [vmem:[%s0 + $0x110] sm:$0xf]
  %v64 = vld [vmem:[%s0 + $0x114] sm:$0xff]
  %v65 = vld [vmem:[%s0 + $0x11c] sm:$0xf]
  %v66 = vld [vmem:[%s0 + $0x120] sm:$0xff]
  %v67 = vld [vmem:[%s0 + $0x128] sm:$0xf]
  %v68 = vld [vmem:[%s0 + $0x12c] sm:$0xff]
  %v69 = vld [vmem:[%s0 + $0x134] sm:$0xf]
  %v70 = vld [vmem:[%s0 + $0x138] sm:$0xff]
  %v71 = vld [vmem:[%s0 + $0x140] sm:$0xf]
  %v72 = vld [vmem:[%s0 + $0x144] sm:$0xff]
  %v73 = vld [vmem:[%s0 + $0x14c] sm:$0xf]
  %v74 = vld [vmem:[%s0 + $0x150] sm:$0xff]
  %v75 = vld [vmem:[%s0 + $0x158] sm:$0xf]
  %v76 = vld [vmem:[%s0 + $0x15c] sm:$0xff]
  %v77 = vld [vmem:[%s0 + $0x164] sm:$0xf]
  %v78 = vld [vmem:[%s0 + $0x168] sm:$0xff]
  %v79 = vld [vmem:[%s0 + $0x170] sm:$0xf]
  %v80 = vld [vmem:[%s0 + $0x174] sm:$0xff]
  %v81 = vld [vmem:[%s0 + $0x17c] sm:$0xf]
  %v82 = vld [vmem:[%s0 + $0x180] sm:$0xff]
  %v83 = vld [vmem:[%s0 + $0x188] sm:$0xf]
  %v84 = vld [vmem:[%s0 + $0x18c] sm:$0xff]
  %v85 = vld [vmem:[%s0 + $0x194] sm:$0xf]
  %v86 = vld [vmem:[%s0 + $0x198] sm:$0xff]
  %v87 = vld [vmem:[%s0 + $0x1a0] sm:$0xf]
  %v88 = vld [vmem:[%s0 + $0x1a4] sm:$0xff]
  %v89 = vld [vmem:[%s0 + $0x1ac] sm:$0xf]
  %v90 = vld [vmem:[%s0 + $0x1b0] sm:$0xff]
  %v91 = vld [vmem:[%s0 + $0x1b8] sm:$0xf]
  %v92 = vld [vmem:[%s0 + $0x1bc] sm:$0xff]
  %v93 = vld [vmem:[%s0 + $0x1c4] sm:$0xf]
  %v94 = vld [vmem:[%s0 + $0x1c8] sm:$0xff]
  %v95 = vld [vmem:[%s0 + $0x1d0] sm:$0xf]
  %v96 = vld [vmem:[%s0 + $0x1d4] sm:$0xff]
  %v97 = vld [vmem:[%s0 + $0x1dc] sm:$0xf]
  %v98 = vld [vmem:[%s0 + $0x1e0] sm:$0xff]
  %v99 = vld [vmem:[%s0 + $0x1e8] sm:$0xf]
  %v100 = vld [vmem:[%s0 + $0x1ec] sm:$0xff]
  %v101 = vld [vmem:[%s0 + $0x1f4] sm:$0xf]
  %v102 = vld [vmem:[%s0 + $0x1f8] sm:$0xff]
  %v103 = vld [vmem:[%s0 + $0x200] sm:$0xf]
  %v104 = vld [vmem:[%s0 + $0x204] sm:$0xff]
  %v105 = vld [vmem:[%s0 + $0x20c] sm:$0xf]
  %v106 = vld [vmem:[%s0 + $0x210] sm:$0xff]
  %v107 = vld [vmem:[%s0 + $0x218] sm:$0xf]
  %v108 = vld [vmem:[%s0 + $0x21c] sm:$0xff]
  %v109 = vld [vmem:[%s0 + $0x224] sm:$0xf]
  %v110 = vld [vmem:[%s0 + $0x228] sm:$0xff]
  %v111 = vld [vmem:[%s0 + $0x230] sm:$0xf]
  %v112 = vld [vmem:[%s0 + $0x234] sm:$0xff]
  %v113 = vld [vmem:[%s0 + $0x23c] sm:$0xf]
  %v114 = vld [vmem:[%s0 + $0x240] sm:$0xff]
  %v115 = vld [vmem:[%s0 + $0x248] sm:$0xf]
  %v116 = vld [vmem:[%s0 + $0x24c] sm:$0xff]
  %v117 = vld [vmem:[%s0 + $0x254] sm:$0xf]
  %v118 = vld [vmem:[%s0 + $0x258] sm:$0xff]
  %v119 = vld [vmem:[%s0 + $0x260] sm:$0xf]
  %v120 = vld [vmem:[%s0 + $0x264] sm:$0xff]
  %v121 = vld [vmem:[%s0 + $0x26c] sm:$0xf]
  %v122 = vld [vmem:[%s0 + $0x270] sm:$0xff]
  %v123 = vld [vmem:[%s0 + $0x278] sm:$0xf]
  %v124 = vld [vmem:[%s0 + $0x27c] sm:$0xff]
  %v125 = vld [vmem:[%s0 + $0x284] sm:$0xf]
  %v126 = vld [vmem:[%s0 + $0x288] sm:$0xff]
  %v127 = vld [vmem:[%s0 + $0x290] sm:$0xf]
  %v128 = vld [vmem:[%s0 + $0x294] sm:$0xff]
  %v129 = vld [vmem:[%s0 + $0x29c] sm:$0xf]
  %v130 = vld [vmem:[%s0 + $0x2a0] sm:$0xff]
  %v131 = vld [vmem:[%s0 + $0x2a8] sm:$0xf]
  %v132 = vld [vmem:[%s0 + $0x2ac] sm:$0xff]
  %v133 = vld [vmem:[%s0 + $0x2b4] sm:$0xf]
  %v134 = vld [vmem:[%s0 + $0x2b8] sm:$0xff]
  %v135 = vld [vmem:[%s0 + $0x2c0] sm:$0xf]
  %v136 = vld [vmem:[%s0 + $0x2c4] sm:$0xff]
  %v137 = vld [vmem:[%s0 + $0x2cc] sm:$0xf]
  %v138 = vld [vmem:[%s0 + $0x2d0] sm:$0xff]
  %v139 = vld [vmem:[%s0 + $0x2d8] sm:$0xf]
  %v140 = vld [vmem:[%s0 + $0x2dc] sm:$0xff]
  %v141 = vld [vmem:[%s0 + $0x2e4] sm:$0xf]
  %v142 = vld [vmem:[%s0 + $0x2e8] sm:$0xff]
  %v143 = vld [vmem:[%s0 + $0x2f0] sm:$0xf]
  %v144 = vld [vmem:[%s0 + $0x2f4] sm:$0xff]
  %v145 = vld [vmem:[%s0 + $0x2fc] sm:$0xf]
  %v146 = vld [vmem:[%s0 + $0x300] sm:$0xff]
  %v147 = vld [vmem:[%s0 + $0x308] sm:$0xf]
  %v148 = vld [vmem:[%s0 + $0x30c] sm:$0xff]
  %v149 = vld [vmem:[%s0 + $0x314] sm:$0xf]
  %v150 = vld [vmem:[%s0 + $0x318] sm:$0xff]
  %v151 = vld [vmem:[%s0 + $0x320] sm:$0xf]
  %v152 = vld [vmem:[%s0 + $0x324] sm:$0xff]
  %v153 = vld [vmem:[%s0 + $0x32c] sm:$0xf]
  %v154 = vld [vmem:[%s0 + $0x330] sm:$0xff]
  %v155 = vld [vmem:[%s0 + $0x338] sm:$0xf]
  %v156 = vld [vmem:[%s0 + $0x33c] sm:$0xff]
  %v157 = vld [vmem:[%s0 + $0x344] sm:$0xf]
  %v158 = vld [vmem:[%s0 + $0x348] sm:$0xff]
  %v159 = vld [vmem:[%s0 + $0x350] sm:$0xf]
  %v160 = vld [vmem:[%s0 + $0x354] sm:$0xff]
  %v161 = vld [vmem:[%s0 + $0x35c] sm:$0xf]
  %v162 = vld [vmem:[%s0 + $0x360] sm:$0xff]
  %v163 = vld [vmem:[%s0 + $0x368] sm:$0xf]
  %v164 = vld [vmem:[%s0 + $0x36c] sm:$0xff]
  %v165 = vld [vmem:[%s0 + $0x374] sm:$0xf]
  %v166 = vld [vmem:[%s0 + $0x378] sm:$0xff]
  %v167 = vld [vmem:[%s0 + $0x380] sm:$0xf]
  %v168 = vld [vmem:[%s0 + $0x384] sm:$0xff]
  %v169 = vld [vmem:[%s0 + $0x38c] sm:$0xf]
  %v170 = vld [vmem:[%s0 + $0x390] sm:$0xff]
  %v171 = vld [vmem:[%s0 + $0x398] sm:$0xf]
  %v172 = vld [vmem:[%s0 + $0x39c] sm:$0xff]
  %v173 = vld [vmem:[%s0 + $0x3a4] sm:$0xf]
  %v174 = vld [vmem:[%s0 + $0x3a8] sm:$0xff]
  %v175 = vld [vmem:[%s0 + $0x3b0] sm:$0xf]
  %v176 = vld [vmem:[%s0 + $0x3b4] sm:$0xff]
  %v177 = vld [vmem:[%s0 + $0x3bc] sm:$0xf]
  %v178 = vld [vmem:[%s0 + $0x3c0] sm:$0xff]
  %v179 = vld [vmem:[%s0 + $0x3c8] sm:$0xf]
  %v180 = vld [vmem:[%s0 + $0x3cc] sm:$0xff]
  %v181 = vld [vmem:[%s0 + $0x3d4] sm:$0xf]
  %v182 = vld [vmem:[%s0 + $0x3d8] sm:$0xff]
  %v183 = vld [vmem:[%s0 + $0x3e0] sm:$0xf]
  %v184 = vld [vmem:[%s0 + $0x3e4] sm:$0xff]
  %v185 = vld [vmem:[%s0 + $0x3ec] sm:$0xf]
  %v186 = vld [vmem:[%s0 + $0x3f0] sm:$0xff]
  %v187 = vld [vmem:[%s0 + $0x3f8] sm:$0xf]
  %v188 = vld [vmem:[%s0 + $0x3fc] sm:$0xff]
  %v189 = vld [vmem:[%s0 + $0x404] sm:$0xf]
  %v190 = vld [vmem:[%s0 + $0x408] sm:$0xff]
  %v191 = vld [vmem:[%s0 + $0x410] sm:$0xf]
  %v192 = vld [vmem:[%s0 + $0x414] sm:$0xff]
  %v193 = vld [vmem:[%s0 + $0x41c] sm:$0xf]
  %v194 = vld [vmem:[%s0 + $0x420] sm:$0xff]
  %v195 = vld [vmem:[%s0 + $0x428] sm:$0xf]
  %v196 = vld [vmem:[%s0 + $0x42c] sm:$0xff]
  %v197 = vld [vmem:[%s0 + $0x434] sm:$0xf]
  %v198 = vld [vmem:[%s0 + $0x438] sm:$0xff]
  %v199 = vld [vmem:[%s0 + $0x440] sm:$0xf]
  %v200 = vld [vmem:[%s0 + $0x444] sm:$0xff]
  %v201 = vld [vmem:[%s0 + $0x44c] sm:$0xf]
  %v202 = vld [vmem:[%s0 + $0x450] sm:$0xff]
  %v203 = vld [vmem:[%s0 + $0x458] sm:$0xf]
  %v204 = vld [vmem:[%s0 + $0x45c] sm:$0xff]
  %v205 = vld [vmem:[%s0 + $0x464] sm:$0xf]
  %v206 = vld [vmem:[%s0 + $0x468] sm:$0xff]
  %v207 = vld [vmem:[%s0 + $0x470] sm:$0xf]
  %v208 = vld [vmem:[%s0 + $0x474] sm:$0xff]
  %v209 = vld [vmem:[%s0 + $0x47c] sm:$0xf]
  %v210 = vld [vmem:[%s0 + $0x480] sm:$0xff]
  %v211 = vld [vmem:[%s0 + $0x488] sm:$0xf]
  %v212 = vld [vmem:[%s0 + $0x48c] sm:$0xff]
  %v213 = vld [vmem:[%s0 + $0x494] sm:$0xf]
  %v214 = vld [vmem:[%s0 + $0x498] sm:$0xff]
  %v215 = vld [vmem:[%s0 + $0x4a0] sm:$0xf]
  %v216 = vld [vmem:[%s0 + $0x4a4] sm:$0xff]
  %v217 = vld [vmem:[%s0 + $0x4ac] sm:$0xf]
  %v218 = vld [vmem:[%s0 + $0x4b0] sm:$0xff]
  %v219 = vld [vmem:[%s0 + $0x4b8] sm:$0xf]
  %v220 = vld [vmem:[%s0 + $0x4bc] sm:$0xff]
  %v221 = vld [vmem:[%s0 + $0x4c4] sm:$0xf]
  %v222 = vld [vmem:[%s0 + $0x4c8] sm:$0xff]
  %v223 = vld [vmem:[%s0 + $0x4d0] sm:$0xf]
  %v224 = vld [vmem:[%s0 + $0x4d4] sm:$0xff]
  %v225 = vld [vmem:[%s0 + $0x4dc] sm:$0xf]
  %v226 = vld [vmem:[%s0 + $0x4e0] sm:$0xff]
  %v227 = vld [vmem:[%s0 + $0x4e8] sm:$0xf]
  %v228 = vld [vmem:[%s0 + $0x4ec] sm:$0xff]
  %v229 = vld [vmem:[%s0 + $0x4f4] sm:$0xf]
  %v230 = vld [vmem:[%s0 + $0x4f8] sm:$0xff]
  %v231 = vld [vmem:[%s0 + $0x500] sm:$0xf]
  %v232 = vld [vmem:[%s0 + $0x504] sm:$0xff]
  %v233 = vld [vmem:[%s0 + $0x50c] sm:$0xf]
  %v234 = vld [vmem:[%s0 + $0x510] sm:$0xff]
  %v235 = vld [vmem:[%s0 + $0x518] sm:$0xf]
  %v236 = vld [vmem:[%s0 + $0x51c] sm:$0xff]
  %v237 = vld [vmem:[%s0 + $0x524] sm:$0xf]
  %v238 = vld [vmem:[%s0 + $0x528] sm:$0xff]
  %v239 = vld [vmem:[%s0 + $0x530] sm:$0xf]
  %v240 = vld [vmem:[%s0 + $0x534] sm:$0xff]
  %v241 = vld [vmem:[%s0 + $0x53c] sm:$0xf]
  %v242 = vld [vmem:[%s0 + $0x540] sm:$0xff]
  %v243 = vld [vmem:[%s0 + $0x548] sm:$0xf]
  %v244 = vld [vmem:[%s0 + $0x54c] sm:$0xff]
  %v245 = vld [vmem:[%s0 + $0x554] sm:$0xf]
  %v246 = vld [vmem:[%s0 + $0x558] sm:$0xff]
  %v247 = vld [vmem:[%s0 + $0x560] sm:$0xf]
  %v248 = vld [vmem:[%s0 + $0x564] sm:$0xff]
  %v249 = vld [vmem:[%s0 + $0x56c] sm:$0xf]
  %v250 = vld [vmem:[%s0 + $0x570] sm:$0xff]
  %v251 = vld [vmem:[%s0 + $0x578] sm:$0xf]
  %v252 = vld [vmem:[%s0 + $0x57c] sm:$0xff]
  %v253 = vld [vmem:[%s0 + $0x584] sm:$0xf]
  %v254 = vld [vmem:[%s0 + $0x588] sm:$0xff]
  %v255 = vld [vmem:[%s0 + $0x590] sm:$0xf]
  %v256 = vld [vmem:[%s0 + $0x594] sm:$0xff]
  %v257 = vld [vmem:[%s0 + $0x59c] sm:$0xf]
  %v258 = vld [vmem:[%s0 + $0x5a0] sm:$0xff]
  %v259 = vld [vmem:[%s0 + $0x5a8] sm:$0xf]
  %v260 = vld [vmem:[%s0 + $0x5ac] sm:$0xff]
  %v261 = vld [vmem:[%s0 + $0x5b4] sm:$0xf]
  %v262 = vld [vmem:[%s0 + $0x5b8] sm:$0xff]
  %v263 = vld [vmem:[%s0 + $0x5c0] sm:$0xf]
  %v264 = vld [vmem:[%s0 + $0x5c4] sm:$0xff]
  %v265 = vld [vmem:[%s0 + $0x5cc] sm:$0xf]
  %v266 = vld [vmem:[%s0 + $0x5d0] sm:$0xff]
  %v267 = vld [vmem:[%s0 + $0x5d8] sm:$0xf]
  %v268 = vld [vmem:[%s0 + $0x5dc] sm:$0xff]
  %v269 = vld [vmem:[%s0 + $0x5e4] sm:$0xf]
  %v270 = vld [vmem:[%s0 + $0x5e8] sm:$0xff]
  %v271 = vld [vmem:[%s0 + $0x5f0] sm:$0xf]
  %v272 = vld [vmem:[%s0 + $0x5f4] sm:$0xff]
  %v273 = vld [vmem:[%s0 + $0x5fc] sm:$0xf]
  %v274 = vld [vmem:[%s1] sm:$0xf]
  %v275 = vld [vmem:[%s1 + $0x4] sm:$0xf]
  %v276 = vld [vmem:[%s1 + $0x8] sm:$0xf]
  %v277 = vld [vmem:[%s1 + $0xc] sm:$0xf]
  %v278 = vld [vmem:[%s1 + $0x10] sm:$0xf]
  %v279 = vld [vmem:[%s1 + $0x14] sm:$0xf]
  %v280 = vld [vmem:[%s1 + $0x18] sm:$0xf]
  %v281 = vld [vmem:[%s1 + $0x1c] sm:$0xf]
  %v282 = vld [vmem:[%s1 + $0x20] sm:$0xf]
  %v283 = vld [vmem:[%s1 + $0x24] sm:$0xf]
  %v284 = vld [vmem:[%s1 + $0x28] sm:$0xf]
  %v285 = vld [vmem:[%s1 + $0x2c] sm:$0xf]
  %v286 = vld [vmem:[%s1 + $0x30] sm:$0xf]
  %v287 = vld [vmem:[%s1 + $0x34] sm:$0xf]
  %v288 = vld [vmem:[%s1 + $0x38] sm:$0xf]
  %v289 = vld [vmem:[%s1 + $0x3c] sm:$0xf]
  %v290 = vld [vmem:[%s1 + $0x40] sm:$0xf]
  %v291 = vld [vmem:[%s1 + $0x44] sm:$0xf]
  %v292 = vld [vmem:[%s1 + $0x48] sm:$0xf]
  %v293 = vld [vmem:[%s1 + $0x4c] sm:$0xf]
  %v294 = vld [vmem:[%s1 + $0x50] sm:$0xf]
  %v295 = vld [vmem:[%s1 + $0x54] sm:$0xf]
  %v296 = vld [vmem:[%s1 + $0x58] sm:$0xf]
  %v297 = vld [vmem:[%s1 + $0x5c] sm:$0xf]
  %v298 = vld [vmem:[%s1 + $0x60] sm:$0xf]
  %v299 = vld [vmem:[%s1 + $0x64] sm:$0xf]
  %v300 = vld [vmem:[%s1 + $0x68] sm:$0xf]
  %v301 = vld [vmem:[%s1 + $0x6c] sm:$0xf]
  %v302 = vld [vmem:[%s1 + $0x70] sm:$0xf]
  %v303 = vld [vmem:[%s1 + $0x74] sm:$0xf]
  %v304 = vld [vmem:[%s1 + $0x78] sm:$0xf]
  %v305 = vld [vmem:[%s1 + $0x7c] sm:$0xf]
  %v306 = vld [vmem:[%s1 + $0x80] sm:$0xf]
  %v307 = vld [vmem:[%s1 + $0x84] sm:$0xf]
  %v308 = vld [vmem:[%s1 + $0x88] sm:$0xf]
  %v309 = vld [vmem:[%s1 + $0x8c] sm:$0xf]
  %v310 = vld [vmem:[%s1 + $0x90] sm:$0x7]
  %v567 = vunpack.c.l.b16 %v18
  %v568 = vunpack.c.h.b16 %v18
  %v569 = vunpack.c.l.b16 %v19
  %v570 = vunpack.c.l.b16 %v20
  %v571 = vunpack.c.h.b16 %v20
  %v572 = vunpack.c.l.b16 %v21
  %v573 = vunpack.c.l.b16 %v22
  %v574 = vunpack.c.h.b16 %v22
  %v575 = vunpack.c.l.b16 %v23
  %v576 = vunpack.c.l.b16 %v24
  %v577 = vunpack.c.h.b16 %v24
  %v578 = vunpack.c.l.b16 %v25
  %v579 = vunpack.c.l.b16 %v26
  %v580 = vunpack.c.h.b16 %v26
  %v581 = vunpack.c.l.b16 %v27
  %v582 = vunpack.c.l.b16 %v28
  %v583 = vunpack.c.h.b16 %v28
  %v584 = vunpack.c.l.b16 %v29
  %v585 = vunpack.c.l.b16 %v30
  %v586 = vunpack.c.h.b16 %v30
  %v587 = vunpack.c.l.b16 %v31
  %v588 = vunpack.c.l.b16 %v32
  %v589 = vunpack.c.h.b16 %v32
  %v590 = vunpack.c.l.b16 %v33
  %v591 = vunpack.c.l.b16 %v34
  %v592 = vunpack.c.h.b16 %v34
  %v593 = vunpack.c.l.b16 %v35
  %v594 = vunpack.c.l.b16 %v36
  %v595 = vunpack.c.h.b16 %v36
  %v596 = vunpack.c.l.b16 %v37
  %v597 = vunpack.c.l.b16 %v38
  %v598 = vunpack.c.h.b16 %v38
  %v599 = vunpack.c.l.b16 %v39
  %v600 = vunpack.c.l.b16 %v40
  %v601 = vunpack.c.h.b16 %v40
  %v602 = vunpack.c.l.b16 %v41
  %v603 = vunpack.c.l.b16 %v42
  %v604 = vunpack.c.h.b16 %v42
  %v605 = vunpack.c.l.b16 %v43
  %v606 = vunpack.c.l.b16 %v44
  %v607 = vunpack.c.h.b16 %v44
  %v608 = vunpack.c.l.b16 %v45
  %v609 = vunpack.c.l.b16 %v46
  %v610 = vunpack.c.h.b16 %v46
  %v611 = vunpack.c.l.b16 %v47
  %v612 = vunpack.c.l.b16 %v48
  %v613 = vunpack.c.h.b16 %v48
  %v614 = vunpack.c.l.b16 %v49
  %v615 = vunpack.c.l.b16 %v50
  %v616 = vunpack.c.h.b16 %v50
  %v617 = vunpack.c.l.b16 %v51
  %v618 = vunpack.c.l.b16 %v52
  %v619 = vunpack.c.h.b16 %v52
  %v620 = vunpack.c.l.b16 %v53
  %v621 = vunpack.c.l.b16 %v54
  %v622 = vunpack.c.h.b16 %v54
  %v623 = vunpack.c.l.b16 %v55
  %v624 = vunpack.c.l.b16 %v56
  %v625 = vunpack.c.h.b16 %v56
  %v626 = vunpack.c.l.b16 %v57
  %v627 = vunpack.c.l.b16 %v58
  %v628 = vunpack.c.h.b16 %v58
  %v629 = vunpack.c.l.b16 %v59
  %v630 = vunpack.c.l.b16 %v60
  %v631 = vunpack.c.h.b16 %v60
  %v632 = vunpack.c.l.b16 %v61
  %v633 = vunpack.c.l.b16 %v62
  %v634 = vunpack.c.h.b16 %v62
  %v635 = vunpack.c.l.b16 %v63
  %v636 = vunpack.c.l.b16 %v64
  %v637 = vunpack.c.h.b16 %v64
  %v638 = vunpack.c.l.b16 %v65
  %v639 = vunpack.c.l.b16 %v66
  %v640 = vunpack.c.h.b16 %v66
  %v641 = vunpack.c.l.b16 %v67
  %v642 = vunpack.c.l.b16 %v68
  %v643 = vunpack.c.h.b16 %v68
  %v644 = vunpack.c.l.b16 %v69
  %v645 = vunpack.c.l.b16 %v70
  %v646 = vunpack.c.h.b16 %v70
  %v647 = vunpack.c.l.b16 %v71
  %v648 = vunpack.c.l.b16 %v72
  %v649 = vunpack.c.h.b16 %v72
  %v650 = vunpack.c.l.b16 %v73
  %v651 = vunpack.c.l.b16 %v74
  %v652 = vunpack.c.h.b16 %v74
  %v653 = vunpack.c.l.b16 %v75
  %v654 = vunpack.c.l.b16 %v76
  %v655 = vunpack.c.h.b16 %v76
  %v656 = vunpack.c.l.b16 %v77
  %v657 = vunpack.c.l.b16 %v78
  %v658 = vunpack.c.h.b16 %v78
  %v659 = vunpack.c.l.b16 %v79
  %v660 = vunpack.c.l.b16 %v80
  %v661 = vunpack.c.h.b16 %v80
  %v662 = vunpack.c.l.b16 %v81
  %v663 = vunpack.c.l.b16 %v82
  %v664 = vunpack.c.h.b16 %v82
  %v665 = vunpack.c.l.b16 %v83
  %v666 = vunpack.c.l.b16 %v84
  %v667 = vunpack.c.h.b16 %v84
  %v668 = vunpack.c.l.b16 %v85
  %v669 = vunpack.c.l.b16 %v86
  %v670 = vunpack.c.h.b16 %v86
  %v671 = vunpack.c.l.b16 %v87
  %v672 = vunpack.c.l.b16 %v88
  %v673 = vunpack.c.h.b16 %v88
  %v674 = vunpack.c.l.b16 %v89
  %v675 = vunpack.c.l.b16 %v90
  %v676 = vunpack.c.h.b16 %v90
  %v677 = vunpack.c.l.b16 %v91
  %v678 = vunpack.c.l.b16 %v92
  %v679 = vunpack.c.h.b16 %v92
  %v680 = vunpack.c.l.b16 %v93
  %v681 = vunpack.c.l.b16 %v94
  %v682 = vunpack.c.h.b16 %v94
  %v683 = vunpack.c.l.b16 %v95
  %v684 = vunpack.c.l.b16 %v96
  %v685 = vunpack.c.h.b16 %v96
  %v686 = vunpack.c.l.b16 %v97
  %v687 = vunpack.c.l.b16 %v98
  %v688 = vunpack.c.h.b16 %v98
  %v689 = vunpack.c.l.b16 %v99
  %v690 = vunpack.c.l.b16 %v100
  %v691 = vunpack.c.h.b16 %v100
  %v692 = vunpack.c.l.b16 %v101
  %v693 = vunpack.c.l.b16 %v102
  %v694 = vunpack.c.h.b16 %v102
  %v695 = vunpack.c.l.b16 %v103
  %v696 = vunpack.c.l.b16 %v104
  %v697 = vunpack.c.h.b16 %v104
  %v698 = vunpack.c.l.b16 %v105
  %v699 = vunpack.c.l.b16 %v106
  %v700 = vunpack.c.h.b16 %v106
  %v701 = vunpack.c.l.b16 %v107
  %v702 = vunpack.c.l.b16 %v108
  %v703 = vunpack.c.h.b16 %v108
  %v704 = vunpack.c.l.b16 %v109
  %v705 = vunpack.c.l.b16 %v110
  %v706 = vunpack.c.h.b16 %v110
  %v707 = vunpack.c.l.b16 %v111
  %v708 = vunpack.c.l.b16 %v112
  %v709 = vunpack.c.h.b16 %v112
  %v710 = vunpack.c.l.b16 %v113
  %v711 = vunpack.c.l.b16 %v114
  %v712 = vunpack.c.h.b16 %v114
  %v713 = vunpack.c.l.b16 %v115
  %v714 = vunpack.c.l.b16 %v116
  %v715 = vunpack.c.h.b16 %v116
  %v716 = vunpack.c.l.b16 %v117
  %v717 = vunpack.c.l.b16 %v118
  %v718 = vunpack.c.h.b16 %v118
  %v719 = vunpack.c.l.b16 %v119
  %v720 = vunpack.c.l.b16 %v120
  %v721 = vunpack.c.h.b16 %v120
  %v722 = vunpack.c.l.b16 %v121
  %v723 = vunpack.c.l.b16 %v122
  %v724 = vunpack.c.h.b16 %v122
  %v725 = vunpack.c.l.b16 %v123
  %v726 = vunpack.c.l.b16 %v124
  %v727 = vunpack.c.h.b16 %v124
  %v728 = vunpack.c.l.b16 %v125
  %v729 = vunpack.c.l.b16 %v126
  %v730 = vunpack.c.h.b16 %v126
  %v731 = vunpack.c.l.b16 %v127
  %v732 = vunpack.c.l.b16 %v128
  %v733 = vunpack.c.h.b16 %v128
  %v734 = vunpack.c.l.b16 %v129
  %v735 = vunpack.c.l.b16 %v130
  %v736 = vunpack.c.h.b16 %v130
  %v737 = vunpack.c.l.b16 %v131
  %v738 = vunpack.c.l.b16 %v132
  %v739 = vunpack.c.h.b16 %v132
  %v740 = vunpack.c.l.b16 %v133
  %v741 = vunpack.c.l.b16 %v134
  %v742 = vunpack.c.h.b16 %v134
  %v743 = vunpack.c.l.b16 %v135
  %v744 = vunpack.c.l.b16 %v136
  %v745 = vunpack.c.h.b16 %v136
  %v746 = vunpack.c.l.b16 %v137
  %v747 = vunpack.c.l.b16 %v138
  %v748 = vunpack.c.h.b16 %v138
  %v749 = vunpack.c.l.b16 %v139
  %v750 = vunpack.c.l.b16 %v140
  %v751 = vunpack.c.h.b16 %v140
  %v752 = vunpack.c.l.b16 %v141
  %v753 = vunpack.c.l.b16 %v142
  %v754 = vunpack.c.h.b16 %v142
  %v755 = vunpack.c.l.b16 %v143
  %v756 = vunpack.c.l.b16 %v144
  %v757 = vunpack.c.h.b16 %v144
  %v758 = vunpack.c.l.b16 %v145
  %v759 = vunpack.c.l.b16 %v146
  %v760 = vunpack.c.h.b16 %v146
  %v761 = vunpack.c.l.b16 %v147
  %v762 = vunpack.c.l.b16 %v148
  %v763 = vunpack.c.h.b16 %v148
  %v764 = vunpack.c.l.b16 %v149
  %v765 = vunpack.c.l.b16 %v150
  %v766 = vunpack.c.h.b16 %v150
  %v767 = vunpack.c.l.b16 %v151
  %v768 = vunpack.c.l.b16 %v152
  %v769 = vunpack.c.h.b16 %v152
  %v770 = vunpack.c.l.b16 %v153
  %v771 = vunpack.c.l.b16 %v154
  %v772 = vunpack.c.h.b16 %v154
  %v773 = vunpack.c.l.b16 %v155
  %v774 = vunpack.c.l.b16 %v156
  %v775 = vunpack.c.h.b16 %v156
  %v776 = vunpack.c.l.b16 %v157
  %v777 = vunpack.c.l.b16 %v158
  %v778 = vunpack.c.h.b16 %v158
  %v779 = vunpack.c.l.b16 %v159
  %v780 = vunpack.c.l.b16 %v160
  %v781 = vunpack.c.h.b16 %v160
  %v782 = vunpack.c.l.b16 %v161
  %v783 = vunpack.c.l.b16 %v162
  %v784 = vunpack.c.h.b16 %v162
  %v785 = vunpack.c.l.b16 %v163
  %v786 = vunpack.c.l.b16 %v164
  %v787 = vunpack.c.h.b16 %v164
  %v788 = vunpack.c.l.b16 %v165
  %v789 = vunpack.c.l.b16 %v166
  %v790 = vunpack.c.h.b16 %v166
  %v791 = vunpack.c.l.b16 %v167
  %v792 = vunpack.c.l.b16 %v168
  %v793 = vunpack.c.h.b16 %v168
  %v794 = vunpack.c.l.b16 %v169
  %v795 = vunpack.c.l.b16 %v170
  %v796 = vunpack.c.h.b16 %v170
  %v797 = vunpack.c.l.b16 %v171
  %v798 = vunpack.c.l.b16 %v172
  %v799 = vunpack.c.h.b16 %v172
  %v800 = vunpack.c.l.b16 %v173
  %v801 = vunpack.c.l.b16 %v174
  %v802 = vunpack.c.h.b16 %v174
  %v803 = vunpack.c.l.b16 %v175
  %v804 = vunpack.c.l.b16 %v176
  %v805 = vunpack.c.h.b16 %v176
  %v806 = vunpack.c.l.b16 %v177
  %v807 = vunpack.c.l.b16 %v178
  %v808 = vunpack.c.h.b16 %v178
  %v809 = vunpack.c.l.b16 %v179
  %v810 = vunpack.c.l.b16 %v180
  %v811 = vunpack.c.h.b16 %v180
  %v812 = vunpack.c.l.b16 %v181
  %v813 = vunpack.c.l.b16 %v182
  %v814 = vunpack.c.h.b16 %v182
  %v815 = vunpack.c.l.b16 %v183
  %v816 = vunpack.c.l.b16 %v184
  %v817 = vunpack.c.h.b16 %v184
  %v818 = vunpack.c.l.b16 %v185
  %v819 = vunpack.c.l.b16 %v186
  %v820 = vunpack.c.h.b16 %v186
  %v821 = vunpack.c.l.b16 %v187
  %v822 = vunpack.c.l.b16 %v188
  %v823 = vunpack.c.h.b16 %v188
  %v824 = vunpack.c.l.b16 %v189
  %v825 = vunpack.c.l.b16 %v190
  %v826 = vunpack.c.h.b16 %v190
  %v827 = vunpack.c.l.b16 %v191
  %v828 = vunpack.c.l.b16 %v192
  %v829 = vunpack.c.h.b16 %v192
  %v830 = vunpack.c.l.b16 %v193
  %v831 = vunpack.c.l.b16 %v194
  %v832 = vunpack.c.h.b16 %v194
  %v833 = vunpack.c.l.b16 %v195
  %v834 = vunpack.c.l.b16 %v196
  %v835 = vunpack.c.h.b16 %v196
  %v836 = vunpack.c.l.b16 %v197
  %v837 = vunpack.c.l.b16 %v198
  %v838 = vunpack.c.h.b16 %v198
  %v839 = vunpack.c.l.b16 %v199
  %v840 = vunpack.c.l.b16 %v200
  %v841 = vunpack.c.h.b16 %v200
  %v842 = vunpack.c.l.b16 %v201
  %v843 = vunpack.c.l.b16 %v202
  %v844 = vunpack.c.h.b16 %v202
  %v845 = vunpack.c.l.b16 %v203
  %v846 = vunpack.c.l.b16 %v204
  %v847 = vunpack.c.h.b16 %v204
  %v848 = vunpack.c.l.b16 %v205
  %v849 = vunpack.c.l.b16 %v206
  %v850 = vunpack.c.h.b16 %v206
  %v851 = vunpack.c.l.b16 %v207
  %v852 = vunpack.c.l.b16 %v208
  %v853 = vunpack.c.h.b16 %v208
  %v854 = vunpack.c.l.b16 %v209
  %v855 = vunpack.c.l.b16 %v210
  %v856 = vunpack.c.h.b16 %v210
  %v857 = vunpack.c.l.b16 %v211
  %v858 = vunpack.c.l.b16 %v212
  %v859 = vunpack.c.h.b16 %v212
  %v860 = vunpack.c.l.b16 %v213
  %v861 = vunpack.c.l.b16 %v214
  %v862 = vunpack.c.h.b16 %v214
  %v863 = vunpack.c.l.b16 %v215
  %v864 = vunpack.c.l.b16 %v216
  %v865 = vunpack.c.h.b16 %v216
  %v866 = vunpack.c.l.b16 %v217
  %v867 = vunpack.c.l.b16 %v218
  %v868 = vunpack.c.h.b16 %v218
  %v869 = vunpack.c.l.b16 %v219
  %v870 = vunpack.c.l.b16 %v220
  %v871 = vunpack.c.h.b16 %v220
  %v872 = vunpack.c.l.b16 %v221
  %v873 = vunpack.c.l.b16 %v222
  %v874 = vunpack.c.h.b16 %v222
  %v875 = vunpack.c.l.b16 %v223
  %v876 = vunpack.c.l.b16 %v224
  %v877 = vunpack.c.h.b16 %v224
  %v878 = vunpack.c.l.b16 %v225
  %v879 = vunpack.c.l.b16 %v226
  %v880 = vunpack.c.h.b16 %v226
  %v881 = vunpack.c.l.b16 %v227
  %v882 = vunpack.c.l.b16 %v228
  %v883 = vunpack.c.h.b16 %v228
  %v884 = vunpack.c.l.b16 %v229
  %v885 = vunpack.c.l.b16 %v230
  %v886 = vunpack.c.h.b16 %v230
  %v887 = vunpack.c.l.b16 %v231
  %v888 = vunpack.c.l.b16 %v232
  %v889 = vunpack.c.h.b16 %v232
  %v890 = vunpack.c.l.b16 %v233
  %v891 = vunpack.c.l.b16 %v234
  %v892 = vunpack.c.h.b16 %v234
  %v893 = vunpack.c.l.b16 %v235
  %v894 = vunpack.c.l.b16 %v236
  %v895 = vunpack.c.h.b16 %v236
  %v896 = vunpack.c.l.b16 %v237
  %v897 = vunpack.c.l.b16 %v238
  %v898 = vunpack.c.h.b16 %v238
  %v899 = vunpack.c.l.b16 %v239
  %v900 = vunpack.c.l.b16 %v240
  %v901 = vunpack.c.h.b16 %v240
  %v902 = vunpack.c.l.b16 %v241
  %v903 = vunpack.c.l.b16 %v242
  %v904 = vunpack.c.h.b16 %v242
  %v905 = vunpack.c.l.b16 %v243
  %v906 = vunpack.c.l.b16 %v244
  %v907 = vunpack.c.h.b16 %v244
  %v908 = vunpack.c.l.b16 %v245
  %v909 = vunpack.c.l.b16 %v246
  %v910 = vunpack.c.h.b16 %v246
  %v911 = vunpack.c.l.b16 %v247
  %v912 = vunpack.c.l.b16 %v248
  %v913 = vunpack.c.h.b16 %v248
  %v914 = vunpack.c.l.b16 %v249
  %v915 = vunpack.c.l.b16 %v250
  %v916 = vunpack.c.h.b16 %v250
  %v917 = vunpack.c.l.b16 %v251
  %v918 = vunpack.c.l.b16 %v252
  %v919 = vunpack.c.h.b16 %v252
  %v920 = vunpack.c.l.b16 %v253
  %v921 = vunpack.c.l.b16 %v254
  %v922 = vunpack.c.h.b16 %v254
  %v923 = vunpack.c.l.b16 %v255
  %v924 = vunpack.c.l.b16 %v256
  %v925 = vunpack.c.h.b16 %v256
  %v926 = vunpack.c.l.b16 %v257
  %v927 = vunpack.c.l.b16 %v258
  %v928 = vunpack.c.h.b16 %v258
  %v929 = vunpack.c.l.b16 %v259
  %v930 = vunpack.c.l.b16 %v260
  %v931 = vunpack.c.h.b16 %v260
  %v932 = vunpack.c.l.b16 %v261
  %v933 = vunpack.c.l.b16 %v262
  %v934 = vunpack.c.h.b16 %v262
  %v935 = vunpack.c.l.b16 %v263
  %v936 = vunpack.c.l.b16 %v264
  %v937 = vunpack.c.h.b16 %v264
  %v938 = vunpack.c.l.b16 %v265
  %v939 = vunpack.c.l.b16 %v266
  %v940 = vunpack.c.h.b16 %v266
  %v941 = vunpack.c.l.b16 %v267
  %v942 = vunpack.c.l.b16 %v268
  %v943 = vunpack.c.h.b16 %v268
  %v944 = vunpack.c.l.b16 %v269
  %v945 = vunpack.c.l.b16 %v270
  %v946 = vunpack.c.h.b16 %v270
  %v947 = vunpack.c.l.b16 %v271
  %v948 = vunpack.c.l.b16 %v272
  %v949 = vunpack.c.h.b16 %v272
  %v950 = vunpack.c.l.b16 %v273
  %v951 = vpack.c.b16 %v570, %v567
  %v952 = vpack.c.b16 %v571, %v568
  %v953 = vpack.c.b16 %v572, %v569
  %v954 = vpack.c.b16 %v576, %v573
  %v955 = vpack.c.b16 %v577, %v574
  %v956 = vpack.c.b16 %v578, %v575
  %v957 = vpack.c.b16 %v582, %v579
  %v958 = vpack.c.b16 %v583, %v580
  %v959 = vpack.c.b16 %v584, %v581
  %v960 = vpack.c.b16 %v588, %v585
  %v961 = vpack.c.b16 %v589, %v586
  %v962 = vpack.c.b16 %v590, %v587
  %v963 = vpack.c.b16 %v594, %v591
  %v964 = vpack.c.b16 %v595, %v592
  %v965 = vpack.c.b16 %v596, %v593
  %v966 = vpack.c.b16 %v600, %v597
  %v967 = vpack.c.b16 %v601, %v598
  %v968 = vpack.c.b16 %v602, %v599
  %v969 = vpack.c.b16 %v606, %v603
  %v970 = vpack.c.b16 %v607, %v604
  %v971 = vpack.c.b16 %v608, %v605
  %v972 = vpack.c.b16 %v612, %v609
  %v973 = vpack.c.b16 %v613, %v610
  %v974 = vpack.c.b16 %v614, %v611
  %v975 = vpack.c.b16 %v618, %v615
  %v976 = vpack.c.b16 %v619, %v616
  %v977 = vpack.c.b16 %v620, %v617
  %v978 = vpack.c.b16 %v624, %v621
  %v979 = vpack.c.b16 %v625, %v622
  %v980 = vpack.c.b16 %v626, %v623
  %v981 = vpack.c.b16 %v630, %v627
  %v982 = vpack.c.b16 %v631, %v628
  %v983 = vpack.c.b16 %v632, %v629
  %v984 = vpack.c.b16 %v636, %v633
  %v985 = vpack.c.b16 %v637, %v634
  %v986 = vpack.c.b16 %v638, %v635
  %v987 = vpack.c.b16 %v642, %v639
  %v988 = vpack.c.b16 %v643, %v640
  %v989 = vpack.c.b16 %v644, %v641
  %v990 = vpack.c.b16 %v648, %v645
  %v991 = vpack.c.b16 %v649, %v646
  %v992 = vpack.c.b16 %v650, %v647
  %v993 = vpack.c.b16 %v654, %v651
  %v994 = vpack.c.b16 %v655, %v652
  %v995 = vpack.c.b16 %v656, %v653
  %v996 = vpack.c.b16 %v660, %v657
  %v997 = vpack.c.b16 %v661, %v658
  %v998 = vpack.c.b16 %v662, %v659
  %v999 = vpack.c.b16 %v666, %v663
  %v1000 = vpack.c.b16 %v667, %v664
  %v1001 = vpack.c.b16 %v668, %v665
  %v1002 = vpack.c.b16 %v672, %v669
  %v1003 = vpack.c.b16 %v673, %v670
  %v1004 = vpack.c.b16 %v674, %v671
  %v1005 = vpack.c.b16 %v678, %v675
  %v1006 = vpack.c.b16 %v679, %v676
  %v1007 = vpack.c.b16 %v680, %v677
  %v1008 = vpack.c.b16 %v684, %v681
  %v1009 = vpack.c.b16 %v685, %v682
  %v1010 = vpack.c.b16 %v686, %v683
  %v1011 = vpack.c.b16 %v690, %v687
  %v1012 = vpack.c.b16 %v691, %v688
  %v1013 = vpack.c.b16 %v692, %v689
  %v1014 = vpack.c.b16 %v696, %v693
  %v1015 = vpack.c.b16 %v697, %v694
  %v1016 = vpack.c.b16 %v698, %v695
  %v1017 = vpack.c.b16 %v702, %v699
  %v1018 = vpack.c.b16 %v703, %v700
  %v1019 = vpack.c.b16 %v704, %v701
  %v1020 = vpack.c.b16 %v708, %v705
  %v1021 = vpack.c.b16 %v709, %v706
  %v1022 = vpack.c.b16 %v710, %v707
  %v1023 = vpack.c.b16 %v714, %v711
  %v1024 = vpack.c.b16 %v715, %v712
  %v1025 = vpack.c.b16 %v716, %v713
  %v1026 = vpack.c.b16 %v720, %v717
  %v1027 = vpack.c.b16 %v721, %v718
  %v1028 = vpack.c.b16 %v722, %v719
  %v1029 = vpack.c.b16 %v726, %v723
  %v1030 = vpack.c.b16 %v727, %v724
  %v1031 = vpack.c.b16 %v728, %v725
  %v1032 = vpack.c.b16 %v732, %v729
  %v1033 = vpack.c.b16 %v733, %v730
  %v1034 = vpack.c.b16 %v734, %v731
  %v1035 = vpack.c.b16 %v738, %v735
  %v1036 = vpack.c.b16 %v739, %v736
  %v1037 = vpack.c.b16 %v740, %v737
  %v1038 = vpack.c.b16 %v744, %v741
  %v1039 = vpack.c.b16 %v745, %v742
  %v1040 = vpack.c.b16 %v746, %v743
  %v1041 = vpack.c.b16 %v750, %v747
  %v1042 = vpack.c.b16 %v751, %v748
  %v1043 = vpack.c.b16 %v752, %v749
  %v1044 = vpack.c.b16 %v756, %v753
  %v1045 = vpack.c.b16 %v757, %v754
  %v1046 = vpack.c.b16 %v758, %v755
  %v1047 = vpack.c.b16 %v762, %v759
  %v1048 = vpack.c.b16 %v763, %v760
  %v1049 = vpack.c.b16 %v764, %v761
  %v1050 = vpack.c.b16 %v768, %v765
  %v1051 = vpack.c.b16 %v769, %v766
  %v1052 = vpack.c.b16 %v770, %v767
  %v1053 = vpack.c.b16 %v774, %v771
  %v1054 = vpack.c.b16 %v775, %v772
  %v1055 = vpack.c.b16 %v776, %v773
  %v1056 = vpack.c.b16 %v780, %v777
  %v1057 = vpack.c.b16 %v781, %v778
  %v1058 = vpack.c.b16 %v782, %v779
  %v1059 = vpack.c.b16 %v786, %v783
  %v1060 = vpack.c.b16 %v787, %v784
  %v1061 = vpack.c.b16 %v788, %v785
  %v1062 = vpack.c.b16 %v792, %v789
  %v1063 = vpack.c.b16 %v793, %v790
  %v1064 = vpack.c.b16 %v794, %v791
  %v1065 = vpack.c.b16 %v798, %v795
  %v1066 = vpack.c.b16 %v799, %v796
  %v1067 = vpack.c.b16 %v800, %v797
  %v1068 = vpack.c.b16 %v804, %v801
  %v1069 = vpack.c.b16 %v805, %v802
  %v1070 = vpack.c.b16 %v806, %v803
  %v1071 = vpack.c.b16 %v810, %v807
  %v1072 = vpack.c.b16 %v811, %v808
  %v1073 = vpack.c.b16 %v812, %v809
  %v1074 = vpack.c.b16 %v816, %v813
  %v1075 = vpack.c.b16 %v817, %v814
  %v1076 = vpack.c.b16 %v818, %v815
  %v1077 = vpack.c.b16 %v822, %v819
  %v1078 = vpack.c.b16 %v823, %v820
  %v1079 = vpack.c.b16 %v824, %v821
  %v1080 = vpack.c.b16 %v828, %v825
  %v1081 = vpack.c.b16 %v829, %v826
  %v1082 = vpack.c.b16 %v830, %v827
  %v1083 = vpack.c.b16 %v834, %v831
  %v1084 = vpack.c.b16 %v835, %v832
  %v1085 = vpack.c.b16 %v836, %v833
  %v1086 = vpack.c.b16 %v840, %v837
  %v1087 = vpack.c.b16 %v841, %v838
  %v1088 = vpack.c.b16 %v842, %v839
  %v1089 = vpack.c.b16 %v846, %v843
  %v1090 = vpack.c.b16 %v847, %v844
  %v1091 = vpack.c.b16 %v848, %v845
  %v1092 = vpack.c.b16 %v852, %v849
  %v1093 = vpack.c.b16 %v853, %v850
  %v1094 = vpack.c.b16 %v854, %v851
  %v1095 = vpack.c.b16 %v858, %v855
  %v1096 = vpack.c.b16 %v859, %v856
  %v1097 = vpack.c.b16 %v860, %v857
  %v1098 = vpack.c.b16 %v864, %v861
  %v1099 = vpack.c.b16 %v865, %v862
  %v1100 = vpack.c.b16 %v866, %v863
  %v1101 = vpack.c.b16 %v870, %v867
  %v1102 = vpack.c.b16 %v871, %v868
  %v1103 = vpack.c.b16 %v872, %v869
  %v1104 = vpack.c.b16 %v876, %v873
  %v1105 = vpack.c.b16 %v877, %v874
  %v1106 = vpack.c.b16 %v878, %v875
  %v1107 = vpack.c.b16 %v882, %v879
  %v1108 = vpack.c.b16 %v883, %v880
  %v1109 = vpack.c.b16 %v884, %v881
  %v1110 = vpack.c.b16 %v888, %v885
  %v1111 = vpack.c.b16 %v889, %v886
  %v1112 = vpack.c.b16 %v890, %v887
  %v1113 = vpack.c.b16 %v894, %v891
  %v1114 = vpack.c.b16 %v895, %v892
  %v1115 = vpack.c.b16 %v896, %v893
  %v1116 = vpack.c.b16 %v900, %v897
  %v1117 = vpack.c.b16 %v901, %v898
  %v1118 = vpack.c.b16 %v902, %v899
  %v1119 = vpack.c.b16 %v906, %v903
  %v1120 = vpack.c.b16 %v907, %v904
  %v1121 = vpack.c.b16 %v908, %v905
  %v1122 = vpack.c.b16 %v912, %v909
  %v1123 = vpack.c.b16 %v913, %v910
  %v1124 = vpack.c.b16 %v914, %v911
  %v1125 = vpack.c.b16 %v918, %v915
  %v1126 = vpack.c.b16 %v919, %v916
  %v1127 = vpack.c.b16 %v920, %v917
  %v1128 = vpack.c.b16 %v924, %v921
  %v1129 = vpack.c.b16 %v925, %v922
  %v1130 = vpack.c.b16 %v926, %v923
  %v1131 = vpack.c.b16 %v930, %v927
  %v1132 = vpack.c.b16 %v931, %v928
  %v1133 = vpack.c.b16 %v932, %v929
  %v1134 = vpack.c.b16 %v936, %v933
  %v1135 = vpack.c.b16 %v937, %v934
  %v1136 = vpack.c.b16 %v938, %v935
  %v1137 = vpack.c.b16 %v942, %v939
  %v1138 = vpack.c.b16 %v943, %v940
  %v1139 = vpack.c.b16 %v944, %v941
  %v1140 = vpack.c.b16 %v948, %v945
  %v1141 = vpack.c.b16 %v949, %v946
  %v1142 = vpack.c.b16 %v950, %v947
  %v1308 = vunpack.c.l.b16 %v274
  %v1309 = vunpack.c.l.b16 %v275
  %v1310 = vunpack.c.l.b16 %v276
  %v1311 = vunpack.c.l.b16 %v277
  %v1312 = vunpack.c.l.b16 %v278
  %v1313 = vunpack.c.l.b16 %v279
  %v1314 = vunpack.c.l.b16 %v280
  %v1315 = vunpack.c.l.b16 %v281
  %v1316 = vunpack.c.l.b16 %v282
  %v1317 = vunpack.c.l.b16 %v283
  %v1318 = vunpack.c.l.b16 %v284
  %v1319 = vunpack.c.l.b16 %v285
  %v1320 = vunpack.c.l.b16 %v286
  %v1321 = vunpack.c.l.b16 %v287
  %v1322 = vunpack.c.l.b16 %v288
  %v1323 = vunpack.c.l.b16 %v289
  %v1324 = vunpack.c.l.b16 %v290
  %v1325 = vunpack.c.l.b16 %v291
  %v1326 = vunpack.c.l.b16 %v292
  %v1327 = vunpack.c.l.b16 %v293
  %v1328 = vunpack.c.l.b16 %v294
  %v1329 = vunpack.c.l.b16 %v295
  %v1330 = vunpack.c.l.b16 %v296
  %v1331 = vunpack.c.l.b16 %v297
  %v1332 = vunpack.c.l.b16 %v298
  %v1333 = vunpack.c.l.b16 %v299
  %v1334 = vunpack.c.l.b16 %v300
  %v1335 = vunpack.c.l.b16 %v301
  %v1336 = vunpack.c.l.b16 %v302
  %v1337 = vunpack.c.l.b16 %v303
  %v1338 = vunpack.c.l.b16 %v304
  %v1339 = vunpack.c.l.b16 %v305
  %v1340 = vunpack.c.l.b16 %v306
  %v1341 = vunpack.c.l.b16 %v307
  %v1342 = vunpack.c.l.b16 %v308
  %v1343 = vunpack.c.l.b16 %v309
  %v1344 = vunpack.c.l.b16 %v310
  %v1345 = vpack.c.b16 %v1309, %v1308
  %v1346 = vpack.c.b16 %v1311, %v1310
  %v1347 = vpack.c.b16 %v1313, %v1312
  %v1348 = vpack.c.b16 %v1315, %v1314
  %v1349 = vpack.c.b16 %v1317, %v1316
  %v1350 = vpack.c.b16 %v1319, %v1318
  %v1351 = vpack.c.b16 %v1321, %v1320
  %v1352 = vpack.c.b16 %v1323, %v1322
  %v1353 = vpack.c.b16 %v1325, %v1324
  %v1354 = vpack.c.b16 %v1327, %v1326
  %v1355 = vpack.c.b16 %v1329, %v1328
  %v1356 = vpack.c.b16 %v1331, %v1330
  %v1357 = vpack.c.b16 %v1333, %v1332
  %v1358 = vpack.c.b16 %v1335, %v1334
  %v1359 = vpack.c.b16 %v1337, %v1336
  %v1360 = vpack.c.b16 %v1339, %v1338
  %v1361 = vpack.c.b16 %v1341, %v1340
  %v1362 = vpack.c.b16 %v1343, %v1342
  %v1363 = vpack.c.b16 %v1344, %v1344
  %vm1382 = vcmask 310272
  %v1384 = vsel %vm1382, %v953, 0
  %v1387 = vsel %vm1382, %v956, 0
  %v1390 = vsel %vm1382, %v959, 0
  %v1393 = vsel %vm1382, %v962, 0
  %v1396 = vsel %vm1382, %v965, 0
  %v1399 = vsel %vm1382, %v968, 0
  %v1402 = vsel %vm1382, %v971, 0
  %v1405 = vsel %vm1382, %v974, 0
  %v1408 = vsel %vm1382, %v977, 0
  %v1411 = vsel %vm1382, %v980, 0
  %v1414 = vsel %vm1382, %v983, 0
  %v1417 = vsel %vm1382, %v986, 0
  %v1420 = vsel %vm1382, %v989, 0
  %v1423 = vsel %vm1382, %v992, 0
  %v1426 = vsel %vm1382, %v995, 0
  %v1429 = vsel %vm1382, %v998, 0
  %v1432 = vsel %vm1382, %v1001, 0
  %v1435 = vsel %vm1382, %v1004, 0
  %v1438 = vsel %vm1382, %v1007, 0
  %v1441 = vsel %vm1382, %v1010, 0
  %v1444 = vsel %vm1382, %v1013, 0
  %v1447 = vsel %vm1382, %v1016, 0
  %v1450 = vsel %vm1382, %v1019, 0
  %v1453 = vsel %vm1382, %v1022, 0
  %v1456 = vsel %vm1382, %v1025, 0
  %v1459 = vsel %vm1382, %v1028, 0
  %v1462 = vsel %vm1382, %v1031, 0
  %v1465 = vsel %vm1382, %v1034, 0
  %v1468 = vsel %vm1382, %v1037, 0
  %v1471 = vsel %vm1382, %v1040, 0
  %v1474 = vsel %vm1382, %v1043, 0
  %v1477 = vsel %vm1382, %v1046, 0
  %v1480 = vsel %vm1382, %v1049, 0
  %v1483 = vsel %vm1382, %v1052, 0
  %v1486 = vsel %vm1382, %v1055, 0
  %v1489 = vsel %vm1382, %v1058, 0
  %v1492 = vsel %vm1382, %v1061, 0
  %v1495 = vsel %vm1382, %v1064, 0
  %v1498 = vsel %vm1382, %v1067, 0
  %v1501 = vsel %vm1382, %v1070, 0
  %v1504 = vsel %vm1382, %v1073, 0
  %v1507 = vsel %vm1382, %v1076, 0
  %v1510 = vsel %vm1382, %v1079, 0
  %v1513 = vsel %vm1382, %v1082, 0
  %v1516 = vsel %vm1382, %v1085, 0
  %v1519 = vsel %vm1382, %v1088, 0
  %v1522 = vsel %vm1382, %v1091, 0
  %v1525 = vsel %vm1382, %v1094, 0
  %v1528 = vsel %vm1382, %v1097, 0
  %v1531 = vsel %vm1382, %v1100, 0
  %v1534 = vsel %vm1382, %v1103, 0
  %v1537 = vsel %vm1382, %v1106, 0
  %v1540 = vsel %vm1382, %v1109, 0
  %v1543 = vsel %vm1382, %v1112, 0
  %v1546 = vsel %vm1382, %v1115, 0
  %v1549 = vsel %vm1382, %v1118, 0
  %v1552 = vsel %vm1382, %v1121, 0
  %v1555 = vsel %vm1382, %v1124, 0
  %v1558 = vsel %vm1382, %v1127, 0
  %v1561 = vsel %vm1382, %v1130, 0
  %v1564 = vsel %vm1382, %v1133, 0
  %v1567 = vsel %vm1382, %v1136, 0
  %v1570 = vsel %vm1382, %v1139, 0
  %v1573 = vsel %vm1382, %v1142, 0
  %vm1575 = vcmask 1042432
  %v1577 = vsel %vm1575, %v1363, 0
  %1579 = vmatprep.subr.bf16.mxu0 0
  %1580 = vmatpush1.bf16.msra.mxu0 %v1352
  %1581 = vmatprep.subr.bf16.mxu0 0
  %1582 = vmatpush1.bf16.msra.mxu0 %v1351
  %1583 = vmatprep.subr.bf16.mxu0 0
  %1584 = vmatpush1.bf16.msra.mxu0 %v1350
  %1585 = vmatprep.subr.bf16.mxu0 0
  %1586 = vmatpush1.bf16.msra.mxu0 %v1349
  %1587 = vmatprep.subr.bf16.mxu0 0
  %1588 = vmatpush1.bf16.msra.mxu0 %v1348
  %1589 = vmatprep.subr.bf16.mxu0 0
  %1590 = vmatpush1.bf16.msra.mxu0 %v1347
  %1591 = vmatprep.subr.bf16.mxu0 0
  %1592 = vmatpush1.bf16.msra.mxu0 %v1346
  %1593 = vmatprep.subr.bf16.mxu0 0
  %1594 = vmatpush1.bf16.msra.mxu0 %v1345
  %1595 = vmatprep.subr.bf16.mxu0 0
  %1596 = vmatpush2.bf16.msra.mxu0 %v1360
  %1597 = vmatprep.subr.bf16.mxu0 0
  %1598 = vmatpush2.bf16.msra.mxu0 %v1359
  %1599 = vmatprep.subr.bf16.mxu0 0
  %1600 = vmatpush2.bf16.msra.mxu0 %v1358
  %1601 = vmatprep.subr.bf16.mxu0 0
  %1602 = vmatpush2.bf16.msra.mxu0 %v1357
  %1603 = vmatprep.subr.bf16.mxu0 0
  %1604 = vmatpush2.bf16.msra.mxu0 %v1356
  %1605 = vmatprep.subr.bf16.mxu0 0
  %1606 = vmatpush2.bf16.msra.mxu0 %v1355
  %1607 = vmatprep.subr.bf16.mxu0 0
  %1608 = vmatpush2.bf16.msra.mxu0 %v1354
  %1609 = vmatprep.subr.bf16.mxu0 0
  %1610 = vmatpush2.bf16.msra.mxu0 %v1353
  %1611 = vmatprep.mubr.bf16.mxu0 %v952
  %1612 = vmatmul.mubr.bf16.gmra.mxu0 %v951
  %v1613 = vpop.f32.mrf.mxu0
  %v1614 = vadd.f32 0.0, %v1613
  %v1615 = vpop.f32.mrf.mxu0
  %v1616 = vpop.f32.mrf.mxu0
  %v1617 = vadd.f32 0.0, %v1616
  %v1618 = vpop.f32.mrf.mxu0
  %1619 = vmatprep.mubr.bf16.mxu0 %v955
  %1620 = vmatmul.mubr.bf16.gmra.mxu0 %v954
  %v1621 = vpop.f32.mrf.mxu0
  %v1622 = vadd.f32 0.0, %v1621
  %v1623 = vpop.f32.mrf.mxu0
  %v1624 = vpop.f32.mrf.mxu0
  %v1625 = vadd.f32 0.0, %v1624
  %v1626 = vpop.f32.mrf.mxu0
  %1627 = vmatprep.mubr.bf16.mxu0 %v958
  %1628 = vmatmul.mubr.bf16.gmra.mxu0 %v957
  %v1629 = vpop.f32.mrf.mxu0
  %v1630 = vadd.f32 0.0, %v1629
  %v1631 = vpop.f32.mrf.mxu0
  %v1632 = vpop.f32.mrf.mxu0
  %v1633 = vadd.f32 0.0, %v1632
  %v1634 = vpop.f32.mrf.mxu0
  %1635 = vmatprep.mubr.bf16.mxu0 %v961
  %1636 = vmatmul.mubr.bf16.gmra.mxu0 %v960
  %v1637 = vpop.f32.mrf.mxu0
  %v1638 = vadd.f32 0.0, %v1637
  %v1639 = vpop.f32.mrf.mxu0
  %v1640 = vpop.f32.mrf.mxu0
  %v1641 = vadd.f32 0.0, %v1640
  %v1642 = vpop.f32.mrf.mxu0
  %1643 = vmatprep.mubr.bf16.mxu0 %v964
  %1644 = vmatmul.mubr.bf16.gmra.mxu0 %v963
  %v1645 = vpop.f32.mrf.mxu0
  %v1646 = vadd.f32 0.0, %v1645
  %v1647 = vpop.f32.mrf.mxu0
  %v1648 = vpop.f32.mrf.mxu0
  %v1649 = vadd.f32 0.0, %v1648
  %v1650 = vpop.f32.mrf.mxu0
  %1651 = vmatprep.mubr.bf16.mxu0 %v967
  %1652 = vmatmul.mubr.bf16.gmra.mxu0 %v966
  %v1653 = vpop.f32.mrf.mxu0
  %v1654 = vadd.f32 0.0, %v1653
  %v1655 = vpop.f32.mrf.mxu0
  %v1656 = vpop.f32.mrf.mxu0
  %v1657 = vadd.f32 0.0, %v1656
  %v1658 = vpop.f32.mrf.mxu0
  %1659 = vmatprep.mubr.bf16.mxu0 %v970
  %1660 = vmatmul.mubr.bf16.gmra.mxu0 %v969
  %v1661 = vpop.f32.mrf.mxu0
  %v1662 = vadd.f32 0.0, %v1661
  %v1663 = vpop.f32.mrf.mxu0
  %v1664 = vpop.f32.mrf.mxu0
  %v1665 = vadd.f32 0.0, %v1664
  %v1666 = vpop.f32.mrf.mxu0
  %1667 = vmatprep.mubr.bf16.mxu0 %v973
  %1668 = vmatmul.mubr.bf16.gmra.mxu0 %v972
  %v1669 = vpop.f32.mrf.mxu0
  %v1670 = vadd.f32 0.0, %v1669
  %v1671 = vpop.f32.mrf.mxu0
  %v1672 = vpop.f32.mrf.mxu0
  %v1673 = vadd.f32 0.0, %v1672
  %v1674 = vpop.f32.mrf.mxu0
  %1675 = vmatprep.mubr.bf16.mxu0 %v976
  %1676 = vmatmul.mubr.bf16.gmra.mxu0 %v975
  %v1677 = vpop.f32.mrf.mxu0
  %v1678 = vadd.f32 0.0, %v1677
  %v1679 = vpop.f32.mrf.mxu0
  %v1680 = vpop.f32.mrf.mxu0
  %v1681 = vadd.f32 0.0, %v1680
  %v1682 = vpop.f32.mrf.mxu0
  %1683 = vmatprep.mubr.bf16.mxu0 %v979
  %1684 = vmatmul.mubr.bf16.gmra.mxu0 %v978
  %v1685 = vpop.f32.mrf.mxu0
  %v1686 = vadd.f32 0.0, %v1685
  %v1687 = vpop.f32.mrf.mxu0
  %v1688 = vpop.f32.mrf.mxu0
  %v1689 = vadd.f32 0.0, %v1688
  %v1690 = vpop.f32.mrf.mxu0
  %1691 = vmatprep.mubr.bf16.mxu0 %v982
  %1692 = vmatmul.mubr.bf16.gmra.mxu0 %v981
  %v1693 = vpop.f32.mrf.mxu0
  %v1694 = vadd.f32 0.0, %v1693
  %v1695 = vpop.f32.mrf.mxu0
  %v1696 = vpop.f32.mrf.mxu0
  %v1697 = vadd.f32 0.0, %v1696
  %v1698 = vpop.f32.mrf.mxu0
  %1699 = vmatprep.mubr.bf16.mxu0 %v985
  %1700 = vmatmul.mubr.bf16.gmra.mxu0 %v984
  %v1701 = vpop.f32.mrf.mxu0
  %v1702 = vadd.f32 0.0, %v1701
  %v1703 = vpop.f32.mrf.mxu0
  %v1704 = vpop.f32.mrf.mxu0
  %v1705 = vadd.f32 0.0, %v1704
  %v1706 = vpop.f32.mrf.mxu0
  %1707 = vmatprep.mubr.bf16.mxu0 %v988
  %1708 = vmatmul.mubr.bf16.gmra.mxu0 %v987
  %v1709 = vpop.f32.mrf.mxu0
  %v1710 = vadd.f32 0.0, %v1709
  %v1711 = vpop.f32.mrf.mxu0
  %v1712 = vpop.f32.mrf.mxu0
  %v1713 = vadd.f32 0.0, %v1712
  %v1714 = vpop.f32.mrf.mxu0
  %1715 = vmatprep.mubr.bf16.mxu0 %v991
  %1716 = vmatmul.mubr.bf16.gmra.mxu0 %v990
  %v1717 = vpop.f32.mrf.mxu0
  %v1718 = vadd.f32 0.0, %v1717
  %v1719 = vpop.f32.mrf.mxu0
  %v1720 = vpop.f32.mrf.mxu0
  %v1721 = vadd.f32 0.0, %v1720
  %v1722 = vpop.f32.mrf.mxu0
  %1723 = vmatprep.mubr.bf16.mxu0 %v994
  %1724 = vmatmul.mubr.bf16.gmra.mxu0 %v993
  %v1725 = vpop.f32.mrf.mxu0
  %v1726 = vadd.f32 0.0, %v1725
  %v1727 = vpop.f32.mrf.mxu0
  %v1728 = vpop.f32.mrf.mxu0
  %v1729 = vadd.f32 0.0, %v1728
  %v1730 = vpop.f32.mrf.mxu0
  %1731 = vmatprep.mubr.bf16.mxu0 %v997
  %1732 = vmatmul.mubr.bf16.gmra.mxu0 %v996
  %v1733 = vpop.f32.mrf.mxu0
  %v1734 = vadd.f32 0.0, %v1733
  %v1735 = vpop.f32.mrf.mxu0
  %v1736 = vpop.f32.mrf.mxu0
  %v1737 = vadd.f32 0.0, %v1736
  %v1738 = vpop.f32.mrf.mxu0
  %1739 = vmatprep.mubr.bf16.mxu0 %v1000
  %1740 = vmatmul.mubr.bf16.gmra.mxu0 %v999
  %v1741 = vpop.f32.mrf.mxu0
  %v1742 = vadd.f32 0.0, %v1741
  %v1743 = vpop.f32.mrf.mxu0
  %v1744 = vpop.f32.mrf.mxu0
  %v1745 = vadd.f32 0.0, %v1744
  %v1746 = vpop.f32.mrf.mxu0
  %1747 = vmatprep.mubr.bf16.mxu0 %v1003
  %1748 = vmatmul.mubr.bf16.gmra.mxu0 %v1002
  %v1749 = vpop.f32.mrf.mxu0
  %v1750 = vadd.f32 0.0, %v1749
  %v1751 = vpop.f32.mrf.mxu0
  %v1752 = vpop.f32.mrf.mxu0
  %v1753 = vadd.f32 0.0, %v1752
  %v1754 = vpop.f32.mrf.mxu0
  %1755 = vmatprep.mubr.bf16.mxu0 %v1006
  %1756 = vmatmul.mubr.bf16.gmra.mxu0 %v1005
  %v1757 = vpop.f32.mrf.mxu0
  %v1758 = vadd.f32 0.0, %v1757
  %v1759 = vpop.f32.mrf.mxu0
  %v1760 = vpop.f32.mrf.mxu0
  %v1761 = vadd.f32 0.0, %v1760
  %v1762 = vpop.f32.mrf.mxu0
  %1763 = vmatprep.mubr.bf16.mxu0 %v1009
  %1764 = vmatmul.mubr.bf16.gmra.mxu0 %v1008
  %v1765 = vpop.f32.mrf.mxu0
  %v1766 = vadd.f32 0.0, %v1765
  %v1767 = vpop.f32.mrf.mxu0
  %v1768 = vpop.f32.mrf.mxu0
  %v1769 = vadd.f32 0.0, %v1768
  %v1770 = vpop.f32.mrf.mxu0
  %1771 = vmatprep.mubr.bf16.mxu0 %v1012
  %1772 = vmatmul.mubr.bf16.gmra.mxu0 %v1011
  %v1773 = vpop.f32.mrf.mxu0
  %v1774 = vadd.f32 0.0, %v1773
  %v1775 = vpop.f32.mrf.mxu0
  %v1776 = vpop.f32.mrf.mxu0
  %v1777 = vadd.f32 0.0, %v1776
  %v1778 = vpop.f32.mrf.mxu0
  %1779 = vmatprep.mubr.bf16.mxu0 %v1015
  %1780 = vmatmul.mubr.bf16.gmra.mxu0 %v1014
  %v1781 = vpop.f32.mrf.mxu0
  %v1782 = vadd.f32 0.0, %v1781
  %v1783 = vpop.f32.mrf.mxu0
  %v1784 = vpop.f32.mrf.mxu0
  %v1785 = vadd.f32 0.0, %v1784
  %v1786 = vpop.f32.mrf.mxu0
  %1787 = vmatprep.mubr.bf16.mxu0 %v1018
  %1788 = vmatmul.mubr.bf16.gmra.mxu0 %v1017
  %v1789 = vpop.f32.mrf.mxu0
  %v1790 = vadd.f32 0.0, %v1789
  %v1791 = vpop.f32.mrf.mxu0
  %v1792 = vpop.f32.mrf.mxu0
  %v1793 = vadd.f32 0.0, %v1792
  %v1794 = vpop.f32.mrf.mxu0
  %1795 = vmatprep.mubr.bf16.mxu0 %v1021
  %1796 = vmatmul.mubr.bf16.gmra.mxu0 %v1020
  %v1797 = vpop.f32.mrf.mxu0
  %v1798 = vadd.f32 0.0, %v1797
  %v1799 = vpop.f32.mrf.mxu0
  %v1800 = vpop.f32.mrf.mxu0
  %v1801 = vadd.f32 0.0, %v1800
  %v1802 = vpop.f32.mrf.mxu0
  %1803 = vmatprep.mubr.bf16.mxu0 %v1024
  %1804 = vmatmul.mubr.bf16.gmra.mxu0 %v1023
  %v1805 = vpop.f32.mrf.mxu0
  %v1806 = vadd.f32 0.0, %v1805
  %v1807 = vpop.f32.mrf.mxu0
  %v1808 = vpop.f32.mrf.mxu0
  %v1809 = vadd.f32 0.0, %v1808
  %v1810 = vpop.f32.mrf.mxu0
  %1811 = vmatprep.mubr.bf16.mxu0 %v1027
  %1812 = vmatmul.mubr.bf16.gmra.mxu0 %v1026
  %v1813 = vpop.f32.mrf.mxu0
  %v1814 = vadd.f32 0.0, %v1813
  %v1815 = vpop.f32.mrf.mxu0
  %v1816 = vpop.f32.mrf.mxu0
  %v1817 = vadd.f32 0.0, %v1816
  %v1818 = vpop.f32.mrf.mxu0
  %1819 = vmatprep.mubr.bf16.mxu0 %v1030
  %1820 = vmatmul.mubr.bf16.gmra.mxu0 %v1029
  %v1821 = vpop.f32.mrf.mxu0
  %v1822 = vadd.f32 0.0, %v1821
  %v1823 = vpop.f32.mrf.mxu0
  %v1824 = vpop.f32.mrf.mxu0
  %v1825 = vadd.f32 0.0, %v1824
  %v1826 = vpop.f32.mrf.mxu0
  %1827 = vmatprep.mubr.bf16.mxu0 %v1033
  %1828 = vmatmul.mubr.bf16.gmra.mxu0 %v1032
  %v1829 = vpop.f32.mrf.mxu0
  %v1830 = vadd.f32 0.0, %v1829
  %v1831 = vpop.f32.mrf.mxu0
  %v1832 = vpop.f32.mrf.mxu0
  %v1833 = vadd.f32 0.0, %v1832
  %v1834 = vpop.f32.mrf.mxu0
  %1835 = vmatprep.mubr.bf16.mxu0 %v1036
  %1836 = vmatmul.mubr.bf16.gmra.mxu0 %v1035
  %v1837 = vpop.f32.mrf.mxu0
  %v1838 = vadd.f32 0.0, %v1837
  %v1839 = vpop.f32.mrf.mxu0
  %v1840 = vpop.f32.mrf.mxu0
  %v1841 = vadd.f32 0.0, %v1840
  %v1842 = vpop.f32.mrf.mxu0
  %1843 = vmatprep.mubr.bf16.mxu0 %v1039
  %1844 = vmatmul.mubr.bf16.gmra.mxu0 %v1038
  %v1845 = vpop.f32.mrf.mxu0
  %v1846 = vadd.f32 0.0, %v1845
  %v1847 = vpop.f32.mrf.mxu0
  %v1848 = vpop.f32.mrf.mxu0
  %v1849 = vadd.f32 0.0, %v1848
  %v1850 = vpop.f32.mrf.mxu0
  %1851 = vmatprep.mubr.bf16.mxu0 %v1042
  %1852 = vmatmul.mubr.bf16.gmra.mxu0 %v1041
  %v1853 = vpop.f32.mrf.mxu0
  %v1854 = vadd.f32 0.0, %v1853
  %v1855 = vpop.f32.mrf.mxu0
  %v1856 = vpop.f32.mrf.mxu0
  %v1857 = vadd.f32 0.0, %v1856
  %v1858 = vpop.f32.mrf.mxu0
  %1859 = vmatprep.mubr.bf16.mxu0 %v1045
  %1860 = vmatmul.mubr.bf16.gmra.mxu0 %v1044
  %v1861 = vpop.f32.mrf.mxu0
  %v1862 = vadd.f32 0.0, %v1861
  %v1863 = vpop.f32.mrf.mxu0
  %v1864 = vpop.f32.mrf.mxu0
  %v1865 = vadd.f32 0.0, %v1864
  %v1866 = vpop.f32.mrf.mxu0
  %1867 = vmatprep.mubr.bf16.mxu0 %v1048
  %1868 = vmatmul.mubr.bf16.gmra.mxu0 %v1047
  %v1869 = vpop.f32.mrf.mxu0
  %v1870 = vadd.f32 0.0, %v1869
  %v1871 = vpop.f32.mrf.mxu0
  %v1872 = vpop.f32.mrf.mxu0
  %v1873 = vadd.f32 0.0, %v1872
  %v1874 = vpop.f32.mrf.mxu0
  %1875 = vmatprep.mubr.bf16.mxu0 %v1051
  %1876 = vmatmul.mubr.bf16.gmra.mxu0 %v1050
  %v1877 = vpop.f32.mrf.mxu0
  %v1878 = vadd.f32 0.0, %v1877
  %v1879 = vpop.f32.mrf.mxu0
  %v1880 = vpop.f32.mrf.mxu0
  %v1881 = vadd.f32 0.0, %v1880
  %v1882 = vpop.f32.mrf.mxu0
  %1883 = vmatprep.mubr.bf16.mxu0 %v1054
  %1884 = vmatmul.mubr.bf16.gmra.mxu0 %v1053
  %v1885 = vpop.f32.mrf.mxu0
  %v1886 = vadd.f32 0.0, %v1885
  %v1887 = vpop.f32.mrf.mxu0
  %v1888 = vpop.f32.mrf.mxu0
  %v1889 = vadd.f32 0.0, %v1888
  %v1890 = vpop.f32.mrf.mxu0
  %1891 = vmatprep.mubr.bf16.mxu0 %v1057
  %1892 = vmatmul.mubr.bf16.gmra.mxu0 %v1056
  %v1893 = vpop.f32.mrf.mxu0
  %v1894 = vadd.f32 0.0, %v1893
  %v1895 = vpop.f32.mrf.mxu0
  %v1896 = vpop.f32.mrf.mxu0
  %v1897 = vadd.f32 0.0, %v1896
  %v1898 = vpop.f32.mrf.mxu0
  %1899 = vmatprep.mubr.bf16.mxu0 %v1060
  %1900 = vmatmul.mubr.bf16.gmra.mxu0 %v1059
  %v1901 = vpop.f32.mrf.mxu0
  %v1902 = vadd.f32 0.0, %v1901
  %v1903 = vpop.f32.mrf.mxu0
  %v1904 = vpop.f32.mrf.mxu0
  %v1905 = vadd.f32 0.0, %v1904
  %v1906 = vpop.f32.mrf.mxu0
  %1907 = vmatprep.mubr.bf16.mxu0 %v1063
  %1908 = vmatmul.mubr.bf16.gmra.mxu0 %v1062
  %v1909 = vpop.f32.mrf.mxu0
  %v1910 = vadd.f32 0.0, %v1909
  %v1911 = vpop.f32.mrf.mxu0
  %v1912 = vpop.f32.mrf.mxu0
  %v1913 = vadd.f32 0.0, %v1912
  %v1914 = vpop.f32.mrf.mxu0
  %1915 = vmatprep.mubr.bf16.mxu0 %v1066
  %1916 = vmatmul.mubr.bf16.gmra.mxu0 %v1065
  %v1917 = vpop.f32.mrf.mxu0
  %v1918 = vadd.f32 0.0, %v1917
  %v1919 = vpop.f32.mrf.mxu0
  %v1920 = vpop.f32.mrf.mxu0
  %v1921 = vadd.f32 0.0, %v1920
  %v1922 = vpop.f32.mrf.mxu0
  %1923 = vmatprep.mubr.bf16.mxu0 %v1069
  %1924 = vmatmul.mubr.bf16.gmra.mxu0 %v1068
  %v1925 = vpop.f32.mrf.mxu0
  %v1926 = vadd.f32 0.0, %v1925
  %v1927 = vpop.f32.mrf.mxu0
  %v1928 = vpop.f32.mrf.mxu0
  %v1929 = vadd.f32 0.0, %v1928
  %v1930 = vpop.f32.mrf.mxu0
  %1931 = vmatprep.mubr.bf16.mxu0 %v1072
  %1932 = vmatmul.mubr.bf16.gmra.mxu0 %v1071
  %v1933 = vpop.f32.mrf.mxu0
  %v1934 = vadd.f32 0.0, %v1933
  %v1935 = vpop.f32.mrf.mxu0
  %v1936 = vpop.f32.mrf.mxu0
  %v1937 = vadd.f32 0.0, %v1936
  %v1938 = vpop.f32.mrf.mxu0
  %1939 = vmatprep.mubr.bf16.mxu0 %v1075
  %1940 = vmatmul.mubr.bf16.gmra.mxu0 %v1074
  %v1941 = vpop.f32.mrf.mxu0
  %v1942 = vadd.f32 0.0, %v1941
  %v1943 = vpop.f32.mrf.mxu0
  %v1944 = vpop.f32.mrf.mxu0
  %v1945 = vadd.f32 0.0, %v1944
  %v1946 = vpop.f32.mrf.mxu0
  %1947 = vmatprep.mubr.bf16.mxu0 %v1078
  %1948 = vmatmul.mubr.bf16.gmra.mxu0 %v1077
  %v1949 = vpop.f32.mrf.mxu0
  %v1950 = vadd.f32 0.0, %v1949
  %v1951 = vpop.f32.mrf.mxu0
  %v1952 = vpop.f32.mrf.mxu0
  %v1953 = vadd.f32 0.0, %v1952
  %v1954 = vpop.f32.mrf.mxu0
  %1955 = vmatprep.mubr.bf16.mxu0 %v1081
  %1956 = vmatmul.mubr.bf16.gmra.mxu0 %v1080
  %v1957 = vpop.f32.mrf.mxu0
  %v1958 = vadd.f32 0.0, %v1957
  %v1959 = vpop.f32.mrf.mxu0
  %v1960 = vpop.f32.mrf.mxu0
  %v1961 = vadd.f32 0.0, %v1960
  %v1962 = vpop.f32.mrf.mxu0
  %1963 = vmatprep.mubr.bf16.mxu0 %v1084
  %1964 = vmatmul.mubr.bf16.gmra.mxu0 %v1083
  %v1965 = vpop.f32.mrf.mxu0
  %v1966 = vadd.f32 0.0, %v1965
  %v1967 = vpop.f32.mrf.mxu0
  %v1968 = vpop.f32.mrf.mxu0
  %v1969 = vadd.f32 0.0, %v1968
  %v1970 = vpop.f32.mrf.mxu0
  %1971 = vmatprep.mubr.bf16.mxu0 %v1087
  %1972 = vmatmul.mubr.bf16.gmra.mxu0 %v1086
  %v1973 = vpop.f32.mrf.mxu0
  %v1974 = vadd.f32 0.0, %v1973
  %v1975 = vpop.f32.mrf.mxu0
  %v1976 = vpop.f32.mrf.mxu0
  %v1977 = vadd.f32 0.0, %v1976
  %v1978 = vpop.f32.mrf.mxu0
  %1979 = vmatprep.mubr.bf16.mxu0 %v1090
  %1980 = vmatmul.mubr.bf16.gmra.mxu0 %v1089
  %v1981 = vpop.f32.mrf.mxu0
  %v1982 = vadd.f32 0.0, %v1981
  %v1983 = vpop.f32.mrf.mxu0
  %v1984 = vpop.f32.mrf.mxu0
  %v1985 = vadd.f32 0.0, %v1984
  %v1986 = vpop.f32.mrf.mxu0
  %1987 = vmatprep.mubr.bf16.mxu0 %v1093
  %1988 = vmatmul.mubr.bf16.gmra.mxu0 %v1092
  %v1989 = vpop.f32.mrf.mxu0
  %v1990 = vadd.f32 0.0, %v1989
  %v1991 = vpop.f32.mrf.mxu0
  %v1992 = vpop.f32.mrf.mxu0
  %v1993 = vadd.f32 0.0, %v1992
  %v1994 = vpop.f32.mrf.mxu0
  %1995 = vmatprep.mubr.bf16.mxu0 %v1096
  %1996 = vmatmul.mubr.bf16.gmra.mxu0 %v1095
  %v1997 = vpop.f32.mrf.mxu0
  %v1998 = vadd.f32 0.0, %v1997
  %v1999 = vpop.f32.mrf.mxu0
  %v2000 = vpop.f32.mrf.mxu0
  %v2001 = vadd.f32 0.0, %v2000
  %v2002 = vpop.f32.mrf.mxu0
  %2003 = vmatprep.mubr.bf16.mxu0 %v1099
  %2004 = vmatmul.mubr.bf16.gmra.mxu0 %v1098
  %v2005 = vpop.f32.mrf.mxu0
  %v2006 = vadd.f32 0.0, %v2005
  %v2007 = vpop.f32.mrf.mxu0
  %v2008 = vpop.f32.mrf.mxu0
  %v2009 = vadd.f32 0.0, %v2008
  %v2010 = vpop.f32.mrf.mxu0
  %2011 = vmatprep.mubr.bf16.mxu0 %v1102
  %2012 = vmatmul.mubr.bf16.gmra.mxu0 %v1101
  %v2013 = vpop.f32.mrf.mxu0
  %v2014 = vadd.f32 0.0, %v2013
  %v2015 = vpop.f32.mrf.mxu0
  %v2016 = vpop.f32.mrf.mxu0
  %v2017 = vadd.f32 0.0, %v2016
  %v2018 = vpop.f32.mrf.mxu0
  %2019 = vmatprep.mubr.bf16.mxu0 %v1105
  %2020 = vmatmul.mubr.bf16.gmra.mxu0 %v1104
  %v2021 = vpop.f32.mrf.mxu0
  %v2022 = vadd.f32 0.0, %v2021
  %v2023 = vpop.f32.mrf.mxu0
  %v2024 = vpop.f32.mrf.mxu0
  %v2025 = vadd.f32 0.0, %v2024
  %v2026 = vpop.f32.mrf.mxu0
  %2027 = vmatprep.mubr.bf16.mxu0 %v1108
  %2028 = vmatmul.mubr.bf16.gmra.mxu0 %v1107
  %v2029 = vpop.f32.mrf.mxu0
  %v2030 = vadd.f32 0.0, %v2029
  %v2031 = vpop.f32.mrf.mxu0
  %v2032 = vpop.f32.mrf.mxu0
  %v2033 = vadd.f32 0.0, %v2032
  %v2034 = vpop.f32.mrf.mxu0
  %2035 = vmatprep.mubr.bf16.mxu0 %v1111
  %2036 = vmatmul.mubr.bf16.gmra.mxu0 %v1110
  %v2037 = vpop.f32.mrf.mxu0
  %v2038 = vadd.f32 0.0, %v2037
  %v2039 = vpop.f32.mrf.mxu0
  %v2040 = vpop.f32.mrf.mxu0
  %v2041 = vadd.f32 0.0, %v2040
  %v2042 = vpop.f32.mrf.mxu0
  %2043 = vmatprep.mubr.bf16.mxu0 %v1114
  %2044 = vmatmul.mubr.bf16.gmra.mxu0 %v1113
  %v2045 = vpop.f32.mrf.mxu0
  %v2046 = vadd.f32 0.0, %v2045
  %v2047 = vpop.f32.mrf.mxu0
  %v2048 = vpop.f32.mrf.mxu0
  %v2049 = vadd.f32 0.0, %v2048
  %v2050 = vpop.f32.mrf.mxu0
  %2051 = vmatprep.mubr.bf16.mxu0 %v1117
  %2052 = vmatmul.mubr.bf16.gmra.mxu0 %v1116
  %v2053 = vpop.f32.mrf.mxu0
  %v2054 = vadd.f32 0.0, %v2053
  %v2055 = vpop.f32.mrf.mxu0
  %v2056 = vpop.f32.mrf.mxu0
  %v2057 = vadd.f32 0.0, %v2056
  %v2058 = vpop.f32.mrf.mxu0
  %2059 = vmatprep.mubr.bf16.mxu0 %v1120
  %2060 = vmatmul.mubr.bf16.gmra.mxu0 %v1119
  %v2061 = vpop.f32.mrf.mxu0
  %v2062 = vadd.f32 0.0, %v2061
  %v2063 = vpop.f32.mrf.mxu0
  %v2064 = vpop.f32.mrf.mxu0
  %v2065 = vadd.f32 0.0, %v2064
  %v2066 = vpop.f32.mrf.mxu0
  %2067 = vmatprep.mubr.bf16.mxu0 %v1123
  %2068 = vmatmul.mubr.bf16.gmra.mxu0 %v1122
  %v2069 = vpop.f32.mrf.mxu0
  %v2070 = vadd.f32 0.0, %v2069
  %v2071 = vpop.f32.mrf.mxu0
  %v2072 = vpop.f32.mrf.mxu0
  %v2073 = vadd.f32 0.0, %v2072
  %v2074 = vpop.f32.mrf.mxu0
  %2075 = vmatprep.mubr.bf16.mxu0 %v1126
  %2076 = vmatmul.mubr.bf16.gmra.mxu0 %v1125
  %v2077 = vpop.f32.mrf.mxu0
  %v2078 = vadd.f32 0.0, %v2077
  %v2079 = vpop.f32.mrf.mxu0
  %v2080 = vpop.f32.mrf.mxu0
  %v2081 = vadd.f32 0.0, %v2080
  %v2082 = vpop.f32.mrf.mxu0
  %2083 = vmatprep.mubr.bf16.mxu0 %v1129
  %2084 = vmatmul.mubr.bf16.gmra.mxu0 %v1128
  %v2085 = vpop.f32.mrf.mxu0
  %v2086 = vadd.f32 0.0, %v2085
  %v2087 = vpop.f32.mrf.mxu0
  %v2088 = vpop.f32.mrf.mxu0
  %v2089 = vadd.f32 0.0, %v2088
  %v2090 = vpop.f32.mrf.mxu0
  %2091 = vmatprep.mubr.bf16.mxu0 %v1132
  %2092 = vmatmul.mubr.bf16.gmra.mxu0 %v1131
  %v2093 = vpop.f32.mrf.mxu0
  %v2094 = vadd.f32 0.0, %v2093
  %v2095 = vpop.f32.mrf.mxu0
  %v2096 = vpop.f32.mrf.mxu0
  %v2097 = vadd.f32 0.0, %v2096
  %v2098 = vpop.f32.mrf.mxu0
  %2099 = vmatprep.mubr.bf16.mxu0 %v1135
  %2100 = vmatmul.mubr.bf16.gmra.mxu0 %v1134
  %v2101 = vpop.f32.mrf.mxu0
  %v2102 = vadd.f32 0.0, %v2101
  %v2103 = vpop.f32.mrf.mxu0
  %v2104 = vpop.f32.mrf.mxu0
  %v2105 = vadd.f32 0.0, %v2104
  %v2106 = vpop.f32.mrf.mxu0
  %2107 = vmatprep.mubr.bf16.mxu0 %v1138
  %2108 = vmatmul.mubr.bf16.gmra.mxu0 %v1137
  %v2109 = vpop.f32.mrf.mxu0
  %v2110 = vadd.f32 0.0, %v2109
  %v2111 = vpop.f32.mrf.mxu0
  %v2112 = vpop.f32.mrf.mxu0
  %v2113 = vadd.f32 0.0, %v2112
  %v2114 = vpop.f32.mrf.mxu0
  %2115 = vmatprep.mubr.bf16.mxu0 %v1141
  %2116 = vmatmul.mubr.bf16.gmra.mxu0 %v1140
  %v2117 = vpop.f32.mrf.mxu0
  %v2118 = vadd.f32 0.0, %v2117
  %v2119 = vpop.f32.mrf.mxu0
  %v2120 = vpop.f32.mrf.mxu0
  %v2121 = vadd.f32 0.0, %v2120
  %v2122 = vpop.f32.mrf.mxu0
  %2123 = vdwg.mxu0
  %2124 = vmatprep.subr.bf16.mxu0 0
  %2125 = vmatpush1.bf16.msra.mxu0 0
  %2126 = vmatprep.subr.bf16.mxu0 0
  %2127 = vmatpush1.bf16.msra.mxu0 0
  %2128 = vmatprep.subr.bf16.mxu0 0
  %2129 = vmatpush1.bf16.msra.mxu0 0
  %2130 = vmatprep.subr.bf16.mxu0 0
  %2131 = vmatpush1.bf16.msra.mxu0 0
  %2132 = vmatprep.subr.bf16.mxu0 0
  %2133 = vmatpush1.bf16.msra.mxu0 0
  %2134 = vmatprep.subr.bf16.mxu0 0
  %2135 = vmatpush1.bf16.msra.mxu0 %v1577
  %2136 = vmatprep.subr.bf16.mxu0 0
  %2137 = vmatpush1.bf16.msra.mxu0 %v1362
  %2138 = vmatprep.subr.bf16.mxu0 0
  %2139 = vmatpush1.bf16.msra.mxu0 %v1361
  %2140 = vmatprep.subr.bf16.mxu0 0
  %2141 = vmatpush2.bf16.msra.mxu0 0
  %2142 = vmatprep.subr.bf16.mxu0 0
  %2143 = vmatpush2.bf16.msra.mxu0 0
  %2144 = vmatprep.subr.bf16.mxu0 0
  %2145 = vmatpush2.bf16.msra.mxu0 0
  %2146 = vmatprep.subr.bf16.mxu0 0
  %2147 = vmatpush2.bf16.msra.mxu0 0
  %2148 = vmatprep.subr.bf16.mxu0 0
  %2149 = vmatpush2.bf16.msra.mxu0 0
  %2150 = vmatprep.subr.bf16.mxu0 0
  %2151 = vmatpush2.bf16.msra.mxu0 0
  %2152 = vmatprep.subr.bf16.mxu0 0
  %2153 = vmatpush2.bf16.msra.mxu0 0
  %2154 = vmatprep.subr.bf16.mxu0 0
  %2155 = vmatpush2.bf16.msra.mxu0 0
  %2156 = vmatprep.mubr.bf16.mxu0 0
  %2157 = vmatmul.mubr.bf16.gmra.mxu0 %v1384
  %v2158 = vpop.f32.mrf.mxu0
  %v2159 = vadd.f32 %v1614, %v2158
  %v2160 = vpop.f32.mrf.mxu0
  %v2161 = vpop.f32.mrf.mxu0
  %v2162 = vadd.f32 %v1617, %v2161
  %v2163 = vpop.f32.mrf.mxu0
  %2164 = vmatprep.mubr.bf16.mxu0 0
  %2165 = vmatmul.mubr.bf16.gmra.mxu0 %v1387
  %v2166 = vpop.f32.mrf.mxu0
  %v2167 = vadd.f32 %v1622, %v2166
  %v2168 = vpop.f32.mrf.mxu0
  %v2169 = vpop.f32.mrf.mxu0
  %v2170 = vadd.f32 %v1625, %v2169
  %v2171 = vpop.f32.mrf.mxu0
  %2172 = vmatprep.mubr.bf16.mxu0 0
  %2173 = vmatmul.mubr.bf16.gmra.mxu0 %v1390
  %v2174 = vpop.f32.mrf.mxu0
  %v2175 = vadd.f32 %v1630, %v2174
  %v2176 = vpop.f32.mrf.mxu0
  %v2177 = vpop.f32.mrf.mxu0
  %v2178 = vadd.f32 %v1633, %v2177
  %v2179 = vpop.f32.mrf.mxu0
  %2180 = vmatprep.mubr.bf16.mxu0 0
  %2181 = vmatmul.mubr.bf16.gmra.mxu0 %v1393
  %v2182 = vpop.f32.mrf.mxu0
  %v2183 = vadd.f32 %v1638, %v2182
  %v2184 = vpop.f32.mrf.mxu0
  %v2185 = vpop.f32.mrf.mxu0
  %v2186 = vadd.f32 %v1641, %v2185
  %v2187 = vpop.f32.mrf.mxu0
  %2188 = vmatprep.mubr.bf16.mxu0 0
  %2189 = vmatmul.mubr.bf16.gmra.mxu0 %v1396
  %v2190 = vpop.f32.mrf.mxu0
  %v2191 = vadd.f32 %v1646, %v2190
  %v2192 = vpop.f32.mrf.mxu0
  %v2193 = vpop.f32.mrf.mxu0
  %v2194 = vadd.f32 %v1649, %v2193
  %v2195 = vpop.f32.mrf.mxu0
  %2196 = vmatprep.mubr.bf16.mxu0 0
  %2197 = vmatmul.mubr.bf16.gmra.mxu0 %v1399
  %v2198 = vpop.f32.mrf.mxu0
  %v2199 = vadd.f32 %v1654, %v2198
  %v2200 = vpop.f32.mrf.mxu0
  %v2201 = vpop.f32.mrf.mxu0
  %v2202 = vadd.f32 %v1657, %v2201
  %v2203 = vpop.f32.mrf.mxu0
  %2204 = vmatprep.mubr.bf16.mxu0 0
  %2205 = vmatmul.mubr.bf16.gmra.mxu0 %v1402
  %v2206 = vpop.f32.mrf.mxu0
  %v2207 = vadd.f32 %v1662, %v2206
  %v2208 = vpop.f32.mrf.mxu0
  %v2209 = vpop.f32.mrf.mxu0
  %v2210 = vadd.f32 %v1665, %v2209
  %v2211 = vpop.f32.mrf.mxu0
  %2212 = vmatprep.mubr.bf16.mxu0 0
  %2213 = vmatmul.mubr.bf16.gmra.mxu0 %v1405
  %v2214 = vpop.f32.mrf.mxu0
  %v2215 = vadd.f32 %v1670, %v2214
  %v2216 = vpop.f32.mrf.mxu0
  %v2217 = vpop.f32.mrf.mxu0
  %v2218 = vadd.f32 %v1673, %v2217
  %v2219 = vpop.f32.mrf.mxu0
  %2220 = vmatprep.mubr.bf16.mxu0 0
  %2221 = vmatmul.mubr.bf16.gmra.mxu0 %v1408
  %v2222 = vpop.f32.mrf.mxu0
  %v2223 = vadd.f32 %v1678, %v2222
  %v2224 = vpop.f32.mrf.mxu0
  %v2225 = vpop.f32.mrf.mxu0
  %v2226 = vadd.f32 %v1681, %v2225
  %v2227 = vpop.f32.mrf.mxu0
  %2228 = vmatprep.mubr.bf16.mxu0 0
  %2229 = vmatmul.mubr.bf16.gmra.mxu0 %v1411
  %v2230 = vpop.f32.mrf.mxu0
  %v2231 = vadd.f32 %v1686, %v2230
  %v2232 = vpop.f32.mrf.mxu0
  %v2233 = vpop.f32.mrf.mxu0
  %v2234 = vadd.f32 %v1689, %v2233
  %v2235 = vpop.f32.mrf.mxu0
  %2236 = vmatprep.mubr.bf16.mxu0 0
  %2237 = vmatmul.mubr.bf16.gmra.mxu0 %v1414
  %v2238 = vpop.f32.mrf.mxu0
  %v2239 = vadd.f32 %v1694, %v2238
  %v2240 = vpop.f32.mrf.mxu0
  %v2241 = vpop.f32.mrf.mxu0
  %v2242 = vadd.f32 %v1697, %v2241
  %v2243 = vpop.f32.mrf.mxu0
  %2244 = vmatprep.mubr.bf16.mxu0 0
  %2245 = vmatmul.mubr.bf16.gmra.mxu0 %v1417
  %v2246 = vpop.f32.mrf.mxu0
  %v2247 = vadd.f32 %v1702, %v2246
  %v2248 = vpop.f32.mrf.mxu0
  %v2249 = vpop.f32.mrf.mxu0
  %v2250 = vadd.f32 %v1705, %v2249
  %v2251 = vpop.f32.mrf.mxu0
  %2252 = vmatprep.mubr.bf16.mxu0 0
  %2253 = vmatmul.mubr.bf16.gmra.mxu0 %v1420
  %v2254 = vpop.f32.mrf.mxu0
  %v2255 = vadd.f32 %v1710, %v2254
  %v2256 = vpop.f32.mrf.mxu0
  %v2257 = vpop.f32.mrf.mxu0
  %v2258 = vadd.f32 %v1713, %v2257
  %v2259 = vpop.f32.mrf.mxu0
  %2260 = vmatprep.mubr.bf16.mxu0 0
  %2261 = vmatmul.mubr.bf16.gmra.mxu0 %v1423
  %v2262 = vpop.f32.mrf.mxu0
  %v2263 = vadd.f32 %v1718, %v2262
  %v2264 = vpop.f32.mrf.mxu0
  %v2265 = vpop.f32.mrf.mxu0
  %v2266 = vadd.f32 %v1721, %v2265
  %v2267 = vpop.f32.mrf.mxu0
  %2268 = vmatprep.mubr.bf16.mxu0 0
  %2269 = vmatmul.mubr.bf16.gmra.mxu0 %v1426
  %v2270 = vpop.f32.mrf.mxu0
  %v2271 = vadd.f32 %v1726, %v2270
  %v2272 = vpop.f32.mrf.mxu0
  %v2273 = vpop.f32.mrf.mxu0
  %v2274 = vadd.f32 %v1729, %v2273
  %v2275 = vpop.f32.mrf.mxu0
  %2276 = vmatprep.mubr.bf16.mxu0 0
  %2277 = vmatmul.mubr.bf16.gmra.mxu0 %v1429
  %v2278 = vpop.f32.mrf.mxu0
  %v2279 = vadd.f32 %v1734, %v2278
  %v2280 = vpop.f32.mrf.mxu0
  %v2281 = vpop.f32.mrf.mxu0
  %v2282 = vadd.f32 %v1737, %v2281
  %v2283 = vpop.f32.mrf.mxu0
  %2284 = vmatprep.mubr.bf16.mxu0 0
  %2285 = vmatmul.mubr.bf16.gmra.mxu0 %v1432
  %v2286 = vpop.f32.mrf.mxu0
  %v2287 = vadd.f32 %v1742, %v2286
  %v2288 = vpop.f32.mrf.mxu0
  %v2289 = vpop.f32.mrf.mxu0
  %v2290 = vadd.f32 %v1745, %v2289
  %v2291 = vpop.f32.mrf.mxu0
  %2292 = vmatprep.mubr.bf16.mxu0 0
  %2293 = vmatmul.mubr.bf16.gmra.mxu0 %v1435
  %v2294 = vpop.f32.mrf.mxu0
  %v2295 = vadd.f32 %v1750, %v2294
  %v2296 = vpop.f32.mrf.mxu0
  %v2297 = vpop.f32.mrf.mxu0
  %v2298 = vadd.f32 %v1753, %v2297
  %v2299 = vpop.f32.mrf.mxu0
  %2300 = vmatprep.mubr.bf16.mxu0 0
  %2301 = vmatmul.mubr.bf16.gmra.mxu0 %v1438
  %v2302 = vpop.f32.mrf.mxu0
  %v2303 = vadd.f32 %v1758, %v2302
  %v2304 = vpop.f32.mrf.mxu0
  %v2305 = vpop.f32.mrf.mxu0
  %v2306 = vadd.f32 %v1761, %v2305
  %v2307 = vpop.f32.mrf.mxu0
  %2308 = vmatprep.mubr.bf16.mxu0 0
  %2309 = vmatmul.mubr.bf16.gmra.mxu0 %v1441
  %v2310 = vpop.f32.mrf.mxu0
  %v2311 = vadd.f32 %v1766, %v2310
  %v2312 = vpop.f32.mrf.mxu0
  %v2313 = vpop.f32.mrf.mxu0
  %v2314 = vadd.f32 %v1769, %v2313
  %v2315 = vpop.f32.mrf.mxu0
  %2316 = vmatprep.mubr.bf16.mxu0 0
  %2317 = vmatmul.mubr.bf16.gmra.mxu0 %v1444
  %v2318 = vpop.f32.mrf.mxu0
  %v2319 = vadd.f32 %v1774, %v2318
  %v2320 = vpop.f32.mrf.mxu0
  %v2321 = vpop.f32.mrf.mxu0
  %v2322 = vadd.f32 %v1777, %v2321
  %v2323 = vpop.f32.mrf.mxu0
  %2324 = vmatprep.mubr.bf16.mxu0 0
  %2325 = vmatmul.mubr.bf16.gmra.mxu0 %v1447
  %v2326 = vpop.f32.mrf.mxu0
  %v2327 = vadd.f32 %v1782, %v2326
  %v2328 = vpop.f32.mrf.mxu0
  %v2329 = vpop.f32.mrf.mxu0
  %v2330 = vadd.f32 %v1785, %v2329
  %v2331 = vpop.f32.mrf.mxu0
  %2332 = vmatprep.mubr.bf16.mxu0 0
  %2333 = vmatmul.mubr.bf16.gmra.mxu0 %v1450
  %v2334 = vpop.f32.mrf.mxu0
  %v2335 = vadd.f32 %v1790, %v2334
  %v2336 = vpop.f32.mrf.mxu0
  %v2337 = vpop.f32.mrf.mxu0
  %v2338 = vadd.f32 %v1793, %v2337
  %v2339 = vpop.f32.mrf.mxu0
  %2340 = vmatprep.mubr.bf16.mxu0 0
  %2341 = vmatmul.mubr.bf16.gmra.mxu0 %v1453
  %v2342 = vpop.f32.mrf.mxu0
  %v2343 = vadd.f32 %v1798, %v2342
  %v2344 = vpop.f32.mrf.mxu0
  %v2345 = vpop.f32.mrf.mxu0
  %v2346 = vadd.f32 %v1801, %v2345
  %v2347 = vpop.f32.mrf.mxu0
  %2348 = vmatprep.mubr.bf16.mxu0 0
  %2349 = vmatmul.mubr.bf16.gmra.mxu0 %v1456
  %v2350 = vpop.f32.mrf.mxu0
  %v2351 = vadd.f32 %v1806, %v2350
  %v2352 = vpop.f32.mrf.mxu0
  %v2353 = vpop.f32.mrf.mxu0
  %v2354 = vadd.f32 %v1809, %v2353
  %v2355 = vpop.f32.mrf.mxu0
  %2356 = vmatprep.mubr.bf16.mxu0 0
  %2357 = vmatmul.mubr.bf16.gmra.mxu0 %v1459
  %v2358 = vpop.f32.mrf.mxu0
  %v2359 = vadd.f32 %v1814, %v2358
  %v2360 = vpop.f32.mrf.mxu0
  %v2361 = vpop.f32.mrf.mxu0
  %v2362 = vadd.f32 %v1817, %v2361
  %v2363 = vpop.f32.mrf.mxu0
  %2364 = vmatprep.mubr.bf16.mxu0 0
  %2365 = vmatmul.mubr.bf16.gmra.mxu0 %v1462
  %v2366 = vpop.f32.mrf.mxu0
  %v2367 = vadd.f32 %v1822, %v2366
  %v2368 = vpop.f32.mrf.mxu0
  %v2369 = vpop.f32.mrf.mxu0
  %v2370 = vadd.f32 %v1825, %v2369
  %v2371 = vpop.f32.mrf.mxu0
  %2372 = vmatprep.mubr.bf16.mxu0 0
  %2373 = vmatmul.mubr.bf16.gmra.mxu0 %v1465
  %v2374 = vpop.f32.mrf.mxu0
  %v2375 = vadd.f32 %v1830, %v2374
  %v2376 = vpop.f32.mrf.mxu0
  %v2377 = vpop.f32.mrf.mxu0
  %v2378 = vadd.f32 %v1833, %v2377
  %v2379 = vpop.f32.mrf.mxu0
  %2380 = vmatprep.mubr.bf16.mxu0 0
  %2381 = vmatmul.mubr.bf16.gmra.mxu0 %v1468
  %v2382 = vpop.f32.mrf.mxu0
  %v2383 = vadd.f32 %v1838, %v2382
  %v2384 = vpop.f32.mrf.mxu0
  %v2385 = vpop.f32.mrf.mxu0
  %v2386 = vadd.f32 %v1841, %v2385
  %v2387 = vpop.f32.mrf.mxu0
  %2388 = vmatprep.mubr.bf16.mxu0 0
  %2389 = vmatmul.mubr.bf16.gmra.mxu0 %v1471
  %v2390 = vpop.f32.mrf.mxu0
  %v2391 = vadd.f32 %v1846, %v2390
  %v2392 = vpop.f32.mrf.mxu0
  %v2393 = vpop.f32.mrf.mxu0
  %v2394 = vadd.f32 %v1849, %v2393
  %v2395 = vpop.f32.mrf.mxu0
  %2396 = vmatprep.mubr.bf16.mxu0 0
  %2397 = vmatmul.mubr.bf16.gmra.mxu0 %v1474
  %v2398 = vpop.f32.mrf.mxu0
  %v2399 = vadd.f32 %v1854, %v2398
  %v2400 = vpop.f32.mrf.mxu0
  %v2401 = vpop.f32.mrf.mxu0
  %v2402 = vadd.f32 %v1857, %v2401
  %v2403 = vpop.f32.mrf.mxu0
  %2404 = vmatprep.mubr.bf16.mxu0 0
  %2405 = vmatmul.mubr.bf16.gmra.mxu0 %v1477
  %v2406 = vpop.f32.mrf.mxu0
  %v2407 = vadd.f32 %v1862, %v2406
  %v2408 = vpop.f32.mrf.mxu0
  %v2409 = vpop.f32.mrf.mxu0
  %v2410 = vadd.f32 %v1865, %v2409
  %v2411 = vpop.f32.mrf.mxu0
  %2412 = vmatprep.mubr.bf16.mxu0 0
  %2413 = vmatmul.mubr.bf16.gmra.mxu0 %v1480
  %v2414 = vpop.f32.mrf.mxu0
  %v2415 = vadd.f32 %v1870, %v2414
  %v2416 = vpop.f32.mrf.mxu0
  %v2417 = vpop.f32.mrf.mxu0
  %v2418 = vadd.f32 %v1873, %v2417
  %v2419 = vpop.f32.mrf.mxu0
  %2420 = vmatprep.mubr.bf16.mxu0 0
  %2421 = vmatmul.mubr.bf16.gmra.mxu0 %v1483
  %v2422 = vpop.f32.mrf.mxu0
  %v2423 = vadd.f32 %v1878, %v2422
  %v2424 = vpop.f32.mrf.mxu0
  %v2425 = vpop.f32.mrf.mxu0
  %v2426 = vadd.f32 %v1881, %v2425
  %v2427 = vpop.f32.mrf.mxu0
  %2428 = vmatprep.mubr.bf16.mxu0 0
  %2429 = vmatmul.mubr.bf16.gmra.mxu0 %v1486
  %v2430 = vpop.f32.mrf.mxu0
  %v2431 = vadd.f32 %v1886, %v2430
  %v2432 = vpop.f32.mrf.mxu0
  %v2433 = vpop.f32.mrf.mxu0
  %v2434 = vadd.f32 %v1889, %v2433
  %v2435 = vpop.f32.mrf.mxu0
  %2436 = vmatprep.mubr.bf16.mxu0 0
  %2437 = vmatmul.mubr.bf16.gmra.mxu0 %v1489
  %v2438 = vpop.f32.mrf.mxu0
  %v2439 = vadd.f32 %v1894, %v2438
  %v2440 = vpop.f32.mrf.mxu0
  %v2441 = vpop.f32.mrf.mxu0
  %v2442 = vadd.f32 %v1897, %v2441
  %v2443 = vpop.f32.mrf.mxu0
  %2444 = vmatprep.mubr.bf16.mxu0 0
  %2445 = vmatmul.mubr.bf16.gmra.mxu0 %v1492
  %v2446 = vpop.f32.mrf.mxu0
  %v2447 = vadd.f32 %v1902, %v2446
  %v2448 = vpop.f32.mrf.mxu0
  %v2449 = vpop.f32.mrf.mxu0
  %v2450 = vadd.f32 %v1905, %v2449
  %v2451 = vpop.f32.mrf.mxu0
  %2452 = vmatprep.mubr.bf16.mxu0 0
  %2453 = vmatmul.mubr.bf16.gmra.mxu0 %v1495
  %v2454 = vpop.f32.mrf.mxu0
  %v2455 = vadd.f32 %v1910, %v2454
  %v2456 = vpop.f32.mrf.mxu0
  %v2457 = vpop.f32.mrf.mxu0
  %v2458 = vadd.f32 %v1913, %v2457
  %v2459 = vpop.f32.mrf.mxu0
  %2460 = vmatprep.mubr.bf16.mxu0 0
  %2461 = vmatmul.mubr.bf16.gmra.mxu0 %v1498
  %v2462 = vpop.f32.mrf.mxu0
  %v2463 = vadd.f32 %v1918, %v2462
  %v2464 = vpop.f32.mrf.mxu0
  %v2465 = vpop.f32.mrf.mxu0
  %v2466 = vadd.f32 %v1921, %v2465
  %v2467 = vpop.f32.mrf.mxu0
  %2468 = vmatprep.mubr.bf16.mxu0 0
  %2469 = vmatmul.mubr.bf16.gmra.mxu0 %v1501
  %v2470 = vpop.f32.mrf.mxu0
  %v2471 = vadd.f32 %v1926, %v2470
  %v2472 = vpop.f32.mrf.mxu0
  %v2473 = vpop.f32.mrf.mxu0
  %v2474 = vadd.f32 %v1929, %v2473
  %v2475 = vpop.f32.mrf.mxu0
  %2476 = vmatprep.mubr.bf16.mxu0 0
  %2477 = vmatmul.mubr.bf16.gmra.mxu0 %v1504
  %v2478 = vpop.f32.mrf.mxu0
  %v2479 = vadd.f32 %v1934, %v2478
  %v2480 = vpop.f32.mrf.mxu0
  %v2481 = vpop.f32.mrf.mxu0
  %v2482 = vadd.f32 %v1937, %v2481
  %v2483 = vpop.f32.mrf.mxu0
  %2484 = vmatprep.mubr.bf16.mxu0 0
  %2485 = vmatmul.mubr.bf16.gmra.mxu0 %v1507
  %v2486 = vpop.f32.mrf.mxu0
  %v2487 = vadd.f32 %v1942, %v2486
  %v2488 = vpop.f32.mrf.mxu0
  %v2489 = vpop.f32.mrf.mxu0
  %v2490 = vadd.f32 %v1945, %v2489
  %v2491 = vpop.f32.mrf.mxu0
  %2492 = vmatprep.mubr.bf16.mxu0 0
  %2493 = vmatmul.mubr.bf16.gmra.mxu0 %v1510
  %v2494 = vpop.f32.mrf.mxu0
  %v2495 = vadd.f32 %v1950, %v2494
  %v2496 = vpop.f32.mrf.mxu0
  %v2497 = vpop.f32.mrf.mxu0
  %v2498 = vadd.f32 %v1953, %v2497
  %v2499 = vpop.f32.mrf.mxu0
  %2500 = vmatprep.mubr.bf16.mxu0 0
  %2501 = vmatmul.mubr.bf16.gmra.mxu0 %v1513
  %v2502 = vpop.f32.mrf.mxu0
  %v2503 = vadd.f32 %v1958, %v2502
  %v2504 = vpop.f32.mrf.mxu0
  %v2505 = vpop.f32.mrf.mxu0
  %v2506 = vadd.f32 %v1961, %v2505
  %v2507 = vpop.f32.mrf.mxu0
  %2508 = vmatprep.mubr.bf16.mxu0 0
  %2509 = vmatmul.mubr.bf16.gmra.mxu0 %v1516
  %v2510 = vpop.f32.mrf.mxu0
  %v2511 = vadd.f32 %v1966, %v2510
  %v2512 = vpop.f32.mrf.mxu0
  %v2513 = vpop.f32.mrf.mxu0
  %v2514 = vadd.f32 %v1969, %v2513
  %v2515 = vpop.f32.mrf.mxu0
  %2516 = vmatprep.mubr.bf16.mxu0 0
  %2517 = vmatmul.mubr.bf16.gmra.mxu0 %v1519
  %v2518 = vpop.f32.mrf.mxu0
  %v2519 = vadd.f32 %v1974, %v2518
  %v2520 = vpop.f32.mrf.mxu0
  %v2521 = vpop.f32.mrf.mxu0
  %v2522 = vadd.f32 %v1977, %v2521
  %v2523 = vpop.f32.mrf.mxu0
  %2524 = vmatprep.mubr.bf16.mxu0 0
  %2525 = vmatmul.mubr.bf16.gmra.mxu0 %v1522
  %v2526 = vpop.f32.mrf.mxu0
  %v2527 = vadd.f32 %v1982, %v2526
  %v2528 = vpop.f32.mrf.mxu0
  %v2529 = vpop.f32.mrf.mxu0
  %v2530 = vadd.f32 %v1985, %v2529
  %v2531 = vpop.f32.mrf.mxu0
  %2532 = vmatprep.mubr.bf16.mxu0 0
  %2533 = vmatmul.mubr.bf16.gmra.mxu0 %v1525
  %v2534 = vpop.f32.mrf.mxu0
  %v2535 = vadd.f32 %v1990, %v2534
  %v2536 = vpop.f32.mrf.mxu0
  %v2537 = vpop.f32.mrf.mxu0
  %v2538 = vadd.f32 %v1993, %v2537
  %v2539 = vpop.f32.mrf.mxu0
  %2540 = vmatprep.mubr.bf16.mxu0 0
  %2541 = vmatmul.mubr.bf16.gmra.mxu0 %v1528
  %v2542 = vpop.f32.mrf.mxu0
  %v2543 = vadd.f32 %v1998, %v2542
  %v2544 = vpop.f32.mrf.mxu0
  %v2545 = vpop.f32.mrf.mxu0
  %v2546 = vadd.f32 %v2001, %v2545
  %v2547 = vpop.f32.mrf.mxu0
  %2548 = vmatprep.mubr.bf16.mxu0 0
  %2549 = vmatmul.mubr.bf16.gmra.mxu0 %v1531
  %v2550 = vpop.f32.mrf.mxu0
  %v2551 = vadd.f32 %v2006, %v2550
  %v2552 = vpop.f32.mrf.mxu0
  %v2553 = vpop.f32.mrf.mxu0
  %v2554 = vadd.f32 %v2009, %v2553
  %v2555 = vpop.f32.mrf.mxu0
  %2556 = vmatprep.mubr.bf16.mxu0 0
  %2557 = vmatmul.mubr.bf16.gmra.mxu0 %v1534
  %v2558 = vpop.f32.mrf.mxu0
  %v2559 = vadd.f32 %v2014, %v2558
  %v2560 = vpop.f32.mrf.mxu0
  %v2561 = vpop.f32.mrf.mxu0
  %v2562 = vadd.f32 %v2017, %v2561
  %v2563 = vpop.f32.mrf.mxu0
  %2564 = vmatprep.mubr.bf16.mxu0 0
  %2565 = vmatmul.mubr.bf16.gmra.mxu0 %v1537
  %v2566 = vpop.f32.mrf.mxu0
  %v2567 = vadd.f32 %v2022, %v2566
  %v2568 = vpop.f32.mrf.mxu0
  %v2569 = vpop.f32.mrf.mxu0
  %v2570 = vadd.f32 %v2025, %v2569
  %v2571 = vpop.f32.mrf.mxu0
  %2572 = vmatprep.mubr.bf16.mxu0 0
  %2573 = vmatmul.mubr.bf16.gmra.mxu0 %v1540
  %v2574 = vpop.f32.mrf.mxu0
  %v2575 = vadd.f32 %v2030, %v2574
  %v2576 = vpop.f32.mrf.mxu0
  %v2577 = vpop.f32.mrf.mxu0
  %v2578 = vadd.f32 %v2033, %v2577
  %v2579 = vpop.f32.mrf.mxu0
  %2580 = vmatprep.mubr.bf16.mxu0 0
  %2581 = vmatmul.mubr.bf16.gmra.mxu0 %v1543
  %v2582 = vpop.f32.mrf.mxu0
  %v2583 = vadd.f32 %v2038, %v2582
  %v2584 = vpop.f32.mrf.mxu0
  %v2585 = vpop.f32.mrf.mxu0
  %v2586 = vadd.f32 %v2041, %v2585
  %v2587 = vpop.f32.mrf.mxu0
  %2588 = vmatprep.mubr.bf16.mxu0 0
  %2589 = vmatmul.mubr.bf16.gmra.mxu0 %v1546
  %v2590 = vpop.f32.mrf.mxu0
  %v2591 = vadd.f32 %v2046, %v2590
  %v2592 = vpop.f32.mrf.mxu0
  %v2593 = vpop.f32.mrf.mxu0
  %v2594 = vadd.f32 %v2049, %v2593
  %v2595 = vpop.f32.mrf.mxu0
  %2596 = vmatprep.mubr.bf16.mxu0 0
  %2597 = vmatmul.mubr.bf16.gmra.mxu0 %v1549
  %v2598 = vpop.f32.mrf.mxu0
  %v2599 = vadd.f32 %v2054, %v2598
  %v2600 = vpop.f32.mrf.mxu0
  %v2601 = vpop.f32.mrf.mxu0
  %v2602 = vadd.f32 %v2057, %v2601
  %v2603 = vpop.f32.mrf.mxu0
  %2604 = vmatprep.mubr.bf16.mxu0 0
  %2605 = vmatmul.mubr.bf16.gmra.mxu0 %v1552
  %v2606 = vpop.f32.mrf.mxu0
  %v2607 = vadd.f32 %v2062, %v2606
  %v2608 = vpop.f32.mrf.mxu0
  %v2609 = vpop.f32.mrf.mxu0
  %v2610 = vadd.f32 %v2065, %v2609
  %v2611 = vpop.f32.mrf.mxu0
  %2612 = vmatprep.mubr.bf16.mxu0 0
  %2613 = vmatmul.mubr.bf16.gmra.mxu0 %v1555
  %v2614 = vpop.f32.mrf.mxu0
  %v2615 = vadd.f32 %v2070, %v2614
  %v2616 = vpop.f32.mrf.mxu0
  %v2617 = vpop.f32.mrf.mxu0
  %v2618 = vadd.f32 %v2073, %v2617
  %v2619 = vpop.f32.mrf.mxu0
  %2620 = vmatprep.mubr.bf16.mxu0 0
  %2621 = vmatmul.mubr.bf16.gmra.mxu0 %v1558
  %v2622 = vpop.f32.mrf.mxu0
  %v2623 = vadd.f32 %v2078, %v2622
  %v2624 = vpop.f32.mrf.mxu0
  %v2625 = vpop.f32.mrf.mxu0
  %v2626 = vadd.f32 %v2081, %v2625
  %v2627 = vpop.f32.mrf.mxu0
  %2628 = vmatprep.mubr.bf16.mxu0 0
  %2629 = vmatmul.mubr.bf16.gmra.mxu0 %v1561
  %v2630 = vpop.f32.mrf.mxu0
  %v2631 = vadd.f32 %v2086, %v2630
  %v2632 = vpop.f32.mrf.mxu0
  %v2633 = vpop.f32.mrf.mxu0
  %v2634 = vadd.f32 %v2089, %v2633
  %v2635 = vpop.f32.mrf.mxu0
  %2636 = vmatprep.mubr.bf16.mxu0 0
  %2637 = vmatmul.mubr.bf16.gmra.mxu0 %v1564
  %v2638 = vpop.f32.mrf.mxu0
  %v2639 = vadd.f32 %v2094, %v2638
  %v2640 = vpop.f32.mrf.mxu0
  %v2641 = vpop.f32.mrf.mxu0
  %v2642 = vadd.f32 %v2097, %v2641
  %v2643 = vpop.f32.mrf.mxu0
  %2644 = vmatprep.mubr.bf16.mxu0 0
  %2645 = vmatmul.mubr.bf16.gmra.mxu0 %v1567
  %v2646 = vpop.f32.mrf.mxu0
  %v2647 = vadd.f32 %v2102, %v2646
  %v2648 = vpop.f32.mrf.mxu0
  %v2649 = vpop.f32.mrf.mxu0
  %v2650 = vadd.f32 %v2105, %v2649
  %v2651 = vpop.f32.mrf.mxu0
  %2652 = vmatprep.mubr.bf16.mxu0 0
  %2653 = vmatmul.mubr.bf16.gmra.mxu0 %v1570
  %v2654 = vpop.f32.mrf.mxu0
  %v2655 = vadd.f32 %v2110, %v2654
  %v2656 = vpop.f32.mrf.mxu0
  %v2657 = vpop.f32.mrf.mxu0
  %v2658 = vadd.f32 %v2113, %v2657
  %v2659 = vpop.f32.mrf.mxu0
  %2660 = vmatprep.mubr.bf16.mxu0 0
  %2661 = vmatmul.mubr.bf16.gmra.mxu0 %v1573
  %v2662 = vpop.f32.mrf.mxu0
  %v2663 = vadd.f32 %v2118, %v2662
  %v2664 = vpop.f32.mrf.mxu0
  %v2665 = vpop.f32.mrf.mxu0
  %v2666 = vadd.f32 %v2121, %v2665
  %v2667 = vpop.f32.mrf.mxu0
  %2668 = vdwg.mxu0
  %v2669 = vld [vmem:[%s2] sm:$0x1]
  %v2670 = vld [vmem:[%s3] sm:$0x1]
  %v2672 = vlaneseq
  %v2673 = vshrl.u32 %v2672, 7
  %v2674 = vsub.s32 0, %v2673
  %v2675 = vrot.slane %v2669, %v2674
  %v2677 = vmul.f32 %v2159, %v2675
  %v2678 = vmul.f32 %v2162, %v2675
  %v2679 = vmul.f32 %v2167, %v2675
  %v2680 = vmul.f32 %v2170, %v2675
  %v2681 = vmul.f32 %v2175, %v2675
  %v2682 = vmul.f32 %v2178, %v2675
  %v2683 = vmul.f32 %v2183, %v2675
  %v2684 = vmul.f32 %v2186, %v2675
  %v2685 = vmul.f32 %v2191, %v2675
  %v2686 = vmul.f32 %v2194, %v2675
  %v2687 = vmul.f32 %v2199, %v2675
  %v2688 = vmul.f32 %v2202, %v2675
  %v2689 = vmul.f32 %v2207, %v2675
  %v2690 = vmul.f32 %v2210, %v2675
  %v2691 = vmul.f32 %v2215, %v2675
  %v2692 = vmul.f32 %v2218, %v2675
  %v2693 = vmul.f32 %v2223, %v2675
  %v2694 = vmul.f32 %v2226, %v2675
  %v2695 = vmul.f32 %v2231, %v2675
  %v2696 = vmul.f32 %v2234, %v2675
  %v2697 = vmul.f32 %v2239, %v2675
  %v2698 = vmul.f32 %v2242, %v2675
  %v2699 = vmul.f32 %v2247, %v2675
  %v2700 = vmul.f32 %v2250, %v2675
  %v2701 = vmul.f32 %v2255, %v2675
  %v2702 = vmul.f32 %v2258, %v2675
  %v2703 = vmul.f32 %v2263, %v2675
  %v2704 = vmul.f32 %v2266, %v2675
  %v2705 = vmul.f32 %v2271, %v2675
  %v2706 = vmul.f32 %v2274, %v2675
  %v2707 = vmul.f32 %v2279, %v2675
  %v2708 = vmul.f32 %v2282, %v2675
  %v2709 = vmul.f32 %v2287, %v2675
  %v2710 = vmul.f32 %v2290, %v2675
  %v2711 = vmul.f32 %v2295, %v2675
  %v2712 = vmul.f32 %v2298, %v2675
  %v2713 = vmul.f32 %v2303, %v2675
  %v2714 = vmul.f32 %v2306, %v2675
  %v2715 = vmul.f32 %v2311, %v2675
  %v2716 = vmul.f32 %v2314, %v2675
  %v2717 = vmul.f32 %v2319, %v2675
  %v2718 = vmul.f32 %v2322, %v2675
  %v2719 = vmul.f32 %v2327, %v2675
  %v2720 = vmul.f32 %v2330, %v2675
  %v2721 = vmul.f32 %v2335, %v2675
  %v2722 = vmul.f32 %v2338, %v2675
  %v2723 = vmul.f32 %v2343, %v2675
  %v2724 = vmul.f32 %v2346, %v2675
  %v2725 = vmul.f32 %v2351, %v2675
  %v2726 = vmul.f32 %v2354, %v2675
  %v2727 = vmul.f32 %v2359, %v2675
  %v2728 = vmul.f32 %v2362, %v2675
  %v2729 = vmul.f32 %v2367, %v2675
  %v2730 = vmul.f32 %v2370, %v2675
  %v2731 = vmul.f32 %v2375, %v2675
  %v2732 = vmul.f32 %v2378, %v2675
  %v2733 = vmul.f32 %v2383, %v2675
  %v2734 = vmul.f32 %v2386, %v2675
  %v2735 = vmul.f32 %v2391, %v2675
  %v2736 = vmul.f32 %v2394, %v2675
  %v2737 = vmul.f32 %v2399, %v2675
  %v2738 = vmul.f32 %v2402, %v2675
  %v2739 = vmul.f32 %v2407, %v2675
  %v2740 = vmul.f32 %v2410, %v2675
  %v2741 = vmul.f32 %v2415, %v2675
  %v2742 = vmul.f32 %v2418, %v2675
  %v2743 = vmul.f32 %v2423, %v2675
  %v2744 = vmul.f32 %v2426, %v2675
  %v2745 = vmul.f32 %v2431, %v2675
  %v2746 = vmul.f32 %v2434, %v2675
  %v2747 = vmul.f32 %v2439, %v2675
  %v2748 = vmul.f32 %v2442, %v2675
  %v2749 = vmul.f32 %v2447, %v2675
  %v2750 = vmul.f32 %v2450, %v2675
  %v2751 = vmul.f32 %v2455, %v2675
  %v2752 = vmul.f32 %v2458, %v2675
  %v2753 = vmul.f32 %v2463, %v2675
  %v2754 = vmul.f32 %v2466, %v2675
  %v2755 = vmul.f32 %v2471, %v2675
  %v2756 = vmul.f32 %v2474, %v2675
  %v2757 = vmul.f32 %v2479, %v2675
  %v2758 = vmul.f32 %v2482, %v2675
  %v2759 = vmul.f32 %v2487, %v2675
  %v2760 = vmul.f32 %v2490, %v2675
  %v2761 = vmul.f32 %v2495, %v2675
  %v2762 = vmul.f32 %v2498, %v2675
  %v2763 = vmul.f32 %v2503, %v2675
  %v2764 = vmul.f32 %v2506, %v2675
  %v2765 = vmul.f32 %v2511, %v2675
  %v2766 = vmul.f32 %v2514, %v2675
  %v2767 = vmul.f32 %v2519, %v2675
  %v2768 = vmul.f32 %v2522, %v2675
  %v2769 = vmul.f32 %v2527, %v2675
  %v2770 = vmul.f32 %v2530, %v2675
  %v2771 = vmul.f32 %v2535, %v2675
  %v2772 = vmul.f32 %v2538, %v2675
  %v2773 = vmul.f32 %v2543, %v2675
  %v2774 = vmul.f32 %v2546, %v2675
  %v2775 = vmul.f32 %v2551, %v2675
  %v2776 = vmul.f32 %v2554, %v2675
  %v2777 = vmul.f32 %v2559, %v2675
  %v2778 = vmul.f32 %v2562, %v2675
  %v2779 = vmul.f32 %v2567, %v2675
  %v2780 = vmul.f32 %v2570, %v2675
  %v2781 = vmul.f32 %v2575, %v2675
  %v2782 = vmul.f32 %v2578, %v2675
  %v2783 = vmul.f32 %v2583, %v2675
  %v2784 = vmul.f32 %v2586, %v2675
  %v2785 = vmul.f32 %v2591, %v2675
  %v2786 = vmul.f32 %v2594, %v2675
  %v2787 = vmul.f32 %v2599, %v2675
  %v2788 = vmul.f32 %v2602, %v2675
  %v2789 = vmul.f32 %v2607, %v2675
  %v2790 = vmul.f32 %v2610, %v2675
  %v2791 = vmul.f32 %v2615, %v2675
  %v2792 = vmul.f32 %v2618, %v2675
  %v2793 = vmul.f32 %v2623, %v2675
  %v2794 = vmul.f32 %v2626, %v2675
  %v2795 = vmul.f32 %v2631, %v2675
  %v2796 = vmul.f32 %v2634, %v2675
  %v2797 = vmul.f32 %v2639, %v2675
  %v2798 = vmul.f32 %v2642, %v2675
  %v2799 = vmul.f32 %v2647, %v2675
  %v2800 = vmul.f32 %v2650, %v2675
  %v2801 = vmul.f32 %v2655, %v2675
  %v2802 = vmul.f32 %v2658, %v2675
  %v2803 = vmul.f32 %v2663, %v2675
  %v2804 = vmul.f32 %v2666, %v2675
  %v2806 = vlaneseq
  %v2807 = vshrl.u32 %v2806, 7
  %v2808 = vsub.s32 0, %v2807
  %v2809 = vrot.slane %v2670, %v2808
  %v2811 = vadd.f32 %v2677, %v2809
  %v2812 = vadd.f32 %v2678, %v2809
  %v2813 = vadd.f32 %v2679, %v2809
  %v2814 = vadd.f32 %v2680, %v2809
  %v2815 = vadd.f32 %v2681, %v2809
  %v2816 = vadd.f32 %v2682, %v2809
  %v2817 = vadd.f32 %v2683, %v2809
  %v2818 = vadd.f32 %v2684, %v2809
  %v2819 = vadd.f32 %v2685, %v2809
  %v2820 = vadd.f32 %v2686, %v2809
  %v2821 = vadd.f32 %v2687, %v2809
  %v2822 = vadd.f32 %v2688, %v2809
  %v2823 = vadd.f32 %v2689, %v2809
  %v2824 = vadd.f32 %v2690, %v2809
  %v2825 = vadd.f32 %v2691, %v2809
  %v2826 = vadd.f32 %v2692, %v2809
  %v2827 = vadd.f32 %v2693, %v2809
  %v2828 = vadd.f32 %v2694, %v2809
  %v2829 = vadd.f32 %v2695, %v2809
  %v2830 = vadd.f32 %v2696, %v2809
  %v2831 = vadd.f32 %v2697, %v2809
  %v2832 = vadd.f32 %v2698, %v2809
  %v2833 = vadd.f32 %v2699, %v2809
  %v2834 = vadd.f32 %v2700, %v2809
  %v2835 = vadd.f32 %v2701, %v2809
  %v2836 = vadd.f32 %v2702, %v2809
  %v2837 = vadd.f32 %v2703, %v2809
  %v2838 = vadd.f32 %v2704, %v2809
  %v2839 = vadd.f32 %v2705, %v2809
  %v2840 = vadd.f32 %v2706, %v2809
  %v2841 = vadd.f32 %v2707, %v2809
  %v2842 = vadd.f32 %v2708, %v2809
  %v2843 = vadd.f32 %v2709, %v2809
  %v2844 = vadd.f32 %v2710, %v2809
  %v2845 = vadd.f32 %v2711, %v2809
  %v2846 = vadd.f32 %v2712, %v2809
  %v2847 = vadd.f32 %v2713, %v2809
  %v2848 = vadd.f32 %v2714, %v2809
  %v2849 = vadd.f32 %v2715, %v2809
  %v2850 = vadd.f32 %v2716, %v2809
  %v2851 = vadd.f32 %v2717, %v2809
  %v2852 = vadd.f32 %v2718, %v2809
  %v2853 = vadd.f32 %v2719, %v2809
  %v2854 = vadd.f32 %v2720, %v2809
  %v2855 = vadd.f32 %v2721, %v2809
  %v2856 = vadd.f32 %v2722, %v2809
  %v2857 = vadd.f32 %v2723, %v2809
  %v2858 = vadd.f32 %v2724, %v2809
  %v2859 = vadd.f32 %v2725, %v2809
  %v2860 = vadd.f32 %v2726, %v2809
  %v2861 = vadd.f32 %v2727, %v2809
  %v2862 = vadd.f32 %v2728, %v2809
  %v2863 = vadd.f32 %v2729, %v2809
  %v2864 = vadd.f32 %v2730, %v2809
  %v2865 = vadd.f32 %v2731, %v2809
  %v2866 = vadd.f32 %v2732, %v2809
  %v2867 = vadd.f32 %v2733, %v2809
  %v2868 = vadd.f32 %v2734, %v2809
  %v2869 = vadd.f32 %v2735, %v2809
  %v2870 = vadd.f32 %v2736, %v2809
  %v2871 = vadd.f32 %v2737, %v2809
  %v2872 = vadd.f32 %v2738, %v2809
  %v2873 = vadd.f32 %v2739, %v2809
  %v2874 = vadd.f32 %v2740, %v2809
  %v2875 = vadd.f32 %v2741, %v2809
  %v2876 = vadd.f32 %v2742, %v2809
  %v2877 = vadd.f32 %v2743, %v2809
  %v2878 = vadd.f32 %v2744, %v2809
  %v2879 = vadd.f32 %v2745, %v2809
  %v2880 = vadd.f32 %v2746, %v2809
  %v2881 = vadd.f32 %v2747, %v2809
  %v2882 = vadd.f32 %v2748, %v2809
  %v2883 = vadd.f32 %v2749, %v2809
  %v2884 = vadd.f32 %v2750, %v2809
  %v2885 = vadd.f32 %v2751, %v2809
  %v2886 = vadd.f32 %v2752, %v2809
  %v2887 = vadd.f32 %v2753, %v2809
  %v2888 = vadd.f32 %v2754, %v2809
  %v2889 = vadd.f32 %v2755, %v2809
  %v2890 = vadd.f32 %v2756, %v2809
  %v2891 = vadd.f32 %v2757, %v2809
  %v2892 = vadd.f32 %v2758, %v2809
  %v2893 = vadd.f32 %v2759, %v2809
  %v2894 = vadd.f32 %v2760, %v2809
  %v2895 = vadd.f32 %v2761, %v2809
  %v2896 = vadd.f32 %v2762, %v2809
  %v2897 = vadd.f32 %v2763, %v2809
  %v2898 = vadd.f32 %v2764, %v2809
  %v2899 = vadd.f32 %v2765, %v2809
  %v2900 = vadd.f32 %v2766, %v2809
  %v2901 = vadd.f32 %v2767, %v2809
  %v2902 = vadd.f32 %v2768, %v2809
  %v2903 = vadd.f32 %v2769, %v2809
  %v2904 = vadd.f32 %v2770, %v2809
  %v2905 = vadd.f32 %v2771, %v2809
  %v2906 = vadd.f32 %v2772, %v2809
  %v2907 = vadd.f32 %v2773, %v2809
  %v2908 = vadd.f32 %v2774, %v2809
  %v2909 = vadd.f32 %v2775, %v2809
  %v2910 = vadd.f32 %v2776, %v2809
  %v2911 = vadd.f32 %v2777, %v2809
  %v2912 = vadd.f32 %v2778, %v2809
  %v2913 = vadd.f32 %v2779, %v2809
  %v2914 = vadd.f32 %v2780, %v2809
  %v2915 = vadd.f32 %v2781, %v2809
  %v2916 = vadd.f32 %v2782, %v2809
  %v2917 = vadd.f32 %v2783, %v2809
  %v2918 = vadd.f32 %v2784, %v2809
  %v2919 = vadd.f32 %v2785, %v2809
  %v2920 = vadd.f32 %v2786, %v2809
  %v2921 = vadd.f32 %v2787, %v2809
  %v2922 = vadd.f32 %v2788, %v2809
  %v2923 = vadd.f32 %v2789, %v2809
  %v2924 = vadd.f32 %v2790, %v2809
  %v2925 = vadd.f32 %v2791, %v2809
  %v2926 = vadd.f32 %v2792, %v2809
  %v2927 = vadd.f32 %v2793, %v2809
  %v2928 = vadd.f32 %v2794, %v2809
  %v2929 = vadd.f32 %v2795, %v2809
  %v2930 = vadd.f32 %v2796, %v2809
  %v2931 = vadd.f32 %v2797, %v2809
  %v2932 = vadd.f32 %v2798, %v2809
  %v2933 = vadd.f32 %v2799, %v2809
  %v2934 = vadd.f32 %v2800, %v2809
  %v2935 = vadd.f32 %v2801, %v2809
  %v2936 = vadd.f32 %v2802, %v2809
  %v2937 = vadd.f32 %v2803, %v2809
  %v2938 = vadd.f32 %v2804, %v2809
  %v2939 = vmax.f32 %v2811, 0.0
  %v2940 = vmax.f32 %v2812, 0.0
  %v2941 = vmax.f32 %v2813, 0.0
  %v2942 = vmax.f32 %v2814, 0.0
  %v2943 = vmax.f32 %v2815, 0.0
  %v2944 = vmax.f32 %v2816, 0.0
  %v2945 = vmax.f32 %v2817, 0.0
  %v2946 = vmax.f32 %v2818, 0.0
  %v2947 = vmax.f32 %v2819, 0.0
  %v2948 = vmax.f32 %v2820, 0.0
  %v2949 = vmax.f32 %v2821, 0.0
  %v2950 = vmax.f32 %v2822, 0.0
  %v2951 = vmax.f32 %v2823, 0.0
  %v2952 = vmax.f32 %v2824, 0.0
  %v2953 = vmax.f32 %v2825, 0.0
  %v2954 = vmax.f32 %v2826, 0.0
  %v2955 = vmax.f32 %v2827, 0.0
  %v2956 = vmax.f32 %v2828, 0.0
  %v2957 = vmax.f32 %v2829, 0.0
  %v2958 = vmax.f32 %v2830, 0.0
  %v2959 = vmax.f32 %v2831, 0.0
  %v2960 = vmax.f32 %v2832, 0.0
  %v2961 = vmax.f32 %v2833, 0.0
  %v2962 = vmax.f32 %v2834, 0.0
  %v2963 = vmax.f32 %v2835, 0.0
  %v2964 = vmax.f32 %v2836, 0.0
  %v2965 = vmax.f32 %v2837, 0.0
  %v2966 = vmax.f32 %v2838, 0.0
  %v2967 = vmax.f32 %v2839, 0.0
  %v2968 = vmax.f32 %v2840, 0.0
  %v2969 = vmax.f32 %v2841, 0.0
  %v2970 = vmax.f32 %v2842, 0.0
  %v2971 = vmax.f32 %v2843, 0.0
  %v2972 = vmax.f32 %v2844, 0.0
  %v2973 = vmax.f32 %v2845, 0.0
  %v2974 = vmax.f32 %v2846, 0.0
  %v2975 = vmax.f32 %v2847, 0.0
  %v2976 = vmax.f32 %v2848, 0.0
  %v2977 = vmax.f32 %v2849, 0.0
  %v2978 = vmax.f32 %v2850, 0.0
  %v2979 = vmax.f32 %v2851, 0.0
  %v2980 = vmax.f32 %v2852, 0.0
  %v2981 = vmax.f32 %v2853, 0.0
  %v2982 = vmax.f32 %v2854, 0.0
  %v2983 = vmax.f32 %v2855, 0.0
  %v2984 = vmax.f32 %v2856, 0.0
  %v2985 = vmax.f32 %v2857, 0.0
  %v2986 = vmax.f32 %v2858, 0.0
  %v2987 = vmax.f32 %v2859, 0.0
  %v2988 = vmax.f32 %v2860, 0.0
  %v2989 = vmax.f32 %v2861, 0.0
  %v2990 = vmax.f32 %v2862, 0.0
  %v2991 = vmax.f32 %v2863, 0.0
  %v2992 = vmax.f32 %v2864, 0.0
  %v2993 = vmax.f32 %v2865, 0.0
  %v2994 = vmax.f32 %v2866, 0.0
  %v2995 = vmax.f32 %v2867, 0.0
  %v2996 = vmax.f32 %v2868, 0.0
  %v2997 = vmax.f32 %v2869, 0.0
  %v2998 = vmax.f32 %v2870, 0.0
  %v2999 = vmax.f32 %v2871, 0.0
  %v3000 = vmax.f32 %v2872, 0.0
  %v3001 = vmax.f32 %v2873, 0.0
  %v3002 = vmax.f32 %v2874, 0.0
  %v3003 = vmax.f32 %v2875, 0.0
  %v3004 = vmax.f32 %v2876, 0.0
  %v3005 = vmax.f32 %v2877, 0.0
  %v3006 = vmax.f32 %v2878, 0.0
  %v3007 = vmax.f32 %v2879, 0.0
  %v3008 = vmax.f32 %v2880, 0.0
  %v3009 = vmax.f32 %v2881, 0.0
  %v3010 = vmax.f32 %v2882, 0.0
  %v3011 = vmax.f32 %v2883, 0.0
  %v3012 = vmax.f32 %v2884, 0.0
  %v3013 = vmax.f32 %v2885, 0.0
  %v3014 = vmax.f32 %v2886, 0.0
  %v3015 = vmax.f32 %v2887, 0.0
  %v3016 = vmax.f32 %v2888, 0.0
  %v3017 = vmax.f32 %v2889, 0.0
  %v3018 = vmax.f32 %v2890, 0.0
  %v3019 = vmax.f32 %v2891, 0.0
  %v3020 = vmax.f32 %v2892, 0.0
  %v3021 = vmax.f32 %v2893, 0.0
  %v3022 = vmax.f32 %v2894, 0.0
  %v3023 = vmax.f32 %v2895, 0.0
  %v3024 = vmax.f32 %v2896, 0.0
  %v3025 = vmax.f32 %v2897, 0.0
  %v3026 = vmax.f32 %v2898, 0.0
  %v3027 = vmax.f32 %v2899, 0.0
  %v3028 = vmax.f32 %v2900, 0.0
  %v3029 = vmax.f32 %v2901, 0.0
  %v3030 = vmax.f32 %v2902, 0.0
  %v3031 = vmax.f32 %v2903, 0.0
  %v3032 = vmax.f32 %v2904, 0.0
  %v3033 = vmax.f32 %v2905, 0.0
  %v3034 = vmax.f32 %v2906, 0.0
  %v3035 = vmax.f32 %v2907, 0.0
  %v3036 = vmax.f32 %v2908, 0.0
  %v3037 = vmax.f32 %v2909, 0.0
  %v3038 = vmax.f32 %v2910, 0.0
  %v3039 = vmax.f32 %v2911, 0.0
  %v3040 = vmax.f32 %v2912, 0.0
  %v3041 = vmax.f32 %v2913, 0.0
  %v3042 = vmax.f32 %v2914, 0.0
  %v3043 = vmax.f32 %v2915, 0.0
  %v3044 = vmax.f32 %v2916, 0.0
  %v3045 = vmax.f32 %v2917, 0.0
  %v3046 = vmax.f32 %v2918, 0.0
  %v3047 = vmax.f32 %v2919, 0.0
  %v3048 = vmax.f32 %v2920, 0.0
  %v3049 = vmax.f32 %v2921, 0.0
  %v3050 = vmax.f32 %v2922, 0.0
  %v3051 = vmax.f32 %v2923, 0.0
  %v3052 = vmax.f32 %v2924, 0.0
  %v3053 = vmax.f32 %v2925, 0.0
  %v3054 = vmax.f32 %v2926, 0.0
  %v3055 = vmax.f32 %v2927, 0.0
  %v3056 = vmax.f32 %v2928, 0.0
  %v3057 = vmax.f32 %v2929, 0.0
  %v3058 = vmax.f32 %v2930, 0.0
  %v3059 = vmax.f32 %v2931, 0.0
  %v3060 = vmax.f32 %v2932, 0.0
  %v3061 = vmax.f32 %v2933, 0.0
  %v3062 = vmax.f32 %v2934, 0.0
  %v3063 = vmax.f32 %v2935, 0.0
  %v3064 = vmax.f32 %v2936, 0.0
  %v3065 = vmax.f32 %v2937, 0.0
  %v3066 = vmax.f32 %v2938, 0.0
  %vm3067 = vcmask 523264
  %3068 = vst.msk [vmem:[%s4] sm:$0xff] %vm3067, %v2939
  %3069 = vst.msk [vmem:[%s4 + $0x8] sm:$0xff] %vm3067, %v2940
  %3070 = vst.msk [vmem:[%s4 + $0x10] sm:$0xff] %vm3067, %v2941
  %3071 = vst.msk [vmem:[%s4 + $0x18] sm:$0xff] %vm3067, %v2942
  %3072 = vst.msk [vmem:[%s4 + $0x20] sm:$0xff] %vm3067, %v2943
  %3073 = vst.msk [vmem:[%s4 + $0x28] sm:$0xff] %vm3067, %v2944
  %3074 = vst.msk [vmem:[%s4 + $0x30] sm:$0xff] %vm3067, %v2945
  %3075 = vst.msk [vmem:[%s4 + $0x38] sm:$0xff] %vm3067, %v2946
  %3076 = vst.msk [vmem:[%s4 + $0x40] sm:$0xff] %vm3067, %v2947
  %3077 = vst.msk [vmem:[%s4 + $0x48] sm:$0xff] %vm3067, %v2948
  %3078 = vst.msk [vmem:[%s4 + $0x50] sm:$0xff] %vm3067, %v2949
  %3079 = vst.msk [vmem:[%s4 + $0x58] sm:$0xff] %vm3067, %v2950
  %3080 = vst.msk [vmem:[%s4 + $0x60] sm:$0xff] %vm3067, %v2951
  %3081 = vst.msk [vmem:[%s4 + $0x68] sm:$0xff] %vm3067, %v2952
  %3082 = vst.msk [vmem:[%s4 + $0x70] sm:$0xff] %vm3067, %v2953
  %3083 = vst.msk [vmem:[%s4 + $0x78] sm:$0xff] %vm3067, %v2954
  %3084 = vst.msk [vmem:[%s4 + $0x80] sm:$0xff] %vm3067, %v2955
  %3085 = vst.msk [vmem:[%s4 + $0x88] sm:$0xff] %vm3067, %v2956
  %3086 = vst.msk [vmem:[%s4 + $0x90] sm:$0xff] %vm3067, %v2957
  %3087 = vst.msk [vmem:[%s4 + $0x98] sm:$0xff] %vm3067, %v2958
  %3088 = vst.msk [vmem:[%s4 + $0xa0] sm:$0xff] %vm3067, %v2959
  %3089 = vst.msk [vmem:[%s4 + $0xa8] sm:$0xff] %vm3067, %v2960
  %3090 = vst.msk [vmem:[%s4 + $0xb0] sm:$0xff] %vm3067, %v2961
  %3091 = vst.msk [vmem:[%s4 + $0xb8] sm:$0xff] %vm3067, %v2962
  %3092 = vst.msk [vmem:[%s4 + $0xc0] sm:$0xff] %vm3067, %v2963
  %3093 = vst.msk [vmem:[%s4 + $0xc8] sm:$0xff] %vm3067, %v2964
  %3094 = vst.msk [vmem:[%s4 + $0xd0] sm:$0xff] %vm3067, %v2965
  %3095 = vst.msk [vmem:[%s4 + $0xd8] sm:$0xff] %vm3067, %v2966
  %3096 = vst.msk [vmem:[%s4 + $0xe0] sm:$0xff] %vm3067, %v2967
  %3097 = vst.msk [vmem:[%s4 + $0xe8] sm:$0xff] %vm3067, %v2968
  %3098 = vst.msk [vmem:[%s4 + $0xf0] sm:$0xff] %vm3067, %v2969
  %3099 = vst.msk [vmem:[%s4 + $0xf8] sm:$0xff] %vm3067, %v2970
  %3100 = vst.msk [vmem:[%s4 + $0x100] sm:$0xff] %vm3067, %v2971
  %3101 = vst.msk [vmem:[%s4 + $0x108] sm:$0xff] %vm3067, %v2972
  %3102 = vst.msk [vmem:[%s4 + $0x110] sm:$0xff] %vm3067, %v2973
  %3103 = vst.msk [vmem:[%s4 + $0x118] sm:$0xff] %vm3067, %v2974
  %3104 = vst.msk [vmem:[%s4 + $0x120] sm:$0xff] %vm3067, %v2975
  %3105 = vst.msk [vmem:[%s4 + $0x128] sm:$0xff] %vm3067, %v2976
  %3106 = vst.msk [vmem:[%s4 + $0x130] sm:$0xff] %vm3067, %v2977
  %3107 = vst.msk [vmem:[%s4 + $0x138] sm:$0xff] %vm3067, %v2978
  %3108 = vst.msk [vmem:[%s4 + $0x140] sm:$0xff] %vm3067, %v2979
  %3109 = vst.msk [vmem:[%s4 + $0x148] sm:$0xff] %vm3067, %v2980
  %3110 = vst.msk [vmem:[%s4 + $0x150] sm:$0xff] %vm3067, %v2981
  %3111 = vst.msk [vmem:[%s4 + $0x158] sm:$0xff] %vm3067, %v2982
  %3112 = vst.msk [vmem:[%s4 + $0x160] sm:$0xff] %vm3067, %v2983
  %3113 = vst.msk [vmem:[%s4 + $0x168] sm:$0xff] %vm3067, %v2984
  %3114 = vst.msk [vmem:[%s4 + $0x170] sm:$0xff] %vm3067, %v2985
  %3115 = vst.msk [vmem:[%s4 + $0x178] sm:$0xff] %vm3067, %v2986
  %3116 = vst.msk [vmem:[%s4 + $0x180] sm:$0xff] %vm3067, %v2987
  %3117 = vst.msk [vmem:[%s4 + $0x188] sm:$0xff] %vm3067, %v2988
  %3118 = vst.msk [vmem:[%s4 + $0x190] sm:$0xff] %vm3067, %v2989
  %3119 = vst.msk [vmem:[%s4 + $0x198] sm:$0xff] %vm3067, %v2990
  %3120 = vst.msk [vmem:[%s4 + $0x1a0] sm:$0xff] %vm3067, %v2991
  %3121 = vst.msk [vmem:[%s4 + $0x1a8] sm:$0xff] %vm3067, %v2992
  %3122 = vst.msk [vmem:[%s4 + $0x1b0] sm:$0xff] %vm3067, %v2993
  %3123 = vst.msk [vmem:[%s4 + $0x1b8] sm:$0xff] %vm3067, %v2994
  %3124 = vst.msk [vmem:[%s4 + $0x1c0] sm:$0xff] %vm3067, %v2995
  %3125 = vst.msk [vmem:[%s4 + $0x1c8] sm:$0xff] %vm3067, %v2996
  %3126 = vst.msk [vmem:[%s4 + $0x1d0] sm:$0xff] %vm3067, %v2997
  %3127 = vst.msk [vmem:[%s4 + $0x1d8] sm:$0xff] %vm3067, %v2998
  %3128 = vst.msk [vmem:[%s4 + $0x1e0] sm:$0xff] %vm3067, %v2999
  %3129 = vst.msk [vmem:[%s4 + $0x1e8] sm:$0xff] %vm3067, %v3000
  %3130 = vst.msk [vmem:[%s4 + $0x1f0] sm:$0xff] %vm3067, %v3001
  %3131 = vst.msk [vmem:[%s4 + $0x1f8] sm:$0xff] %vm3067, %v3002
  %3132 = vst.msk [vmem:[%s4 + $0x200] sm:$0xff] %vm3067, %v3003
  %3133 = vst.msk [vmem:[%s4 + $0x208] sm:$0xff] %vm3067, %v3004
  %3134 = vst.msk [vmem:[%s4 + $0x210] sm:$0xff] %vm3067, %v3005
  %3135 = vst.msk [vmem:[%s4 + $0x218] sm:$0xff] %vm3067, %v3006
  %3136 = vst.msk [vmem:[%s4 + $0x220] sm:$0xff] %vm3067, %v3007
  %3137 = vst.msk [vmem:[%s4 + $0x228] sm:$0xff] %vm3067, %v3008
  %3138 = vst.msk [vmem:[%s4 + $0x230] sm:$0xff] %vm3067, %v3009
  %3139 = vst.msk [vmem:[%s4 + $0x238] sm:$0xff] %vm3067, %v3010
  %3140 = vst.msk [vmem:[%s4 + $0x240] sm:$0xff] %vm3067, %v3011
  %3141 = vst.msk [vmem:[%s4 + $0x248] sm:$0xff] %vm3067, %v3012
  %3142 = vst.msk [vmem:[%s4 + $0x250] sm:$0xff] %vm3067, %v3013
  %3143 = vst.msk [vmem:[%s4 + $0x258] sm:$0xff] %vm3067, %v3014
  %3144 = vst.msk [vmem:[%s4 + $0x260] sm:$0xff] %vm3067, %v3015
  %3145 = vst.msk [vmem:[%s4 + $0x268] sm:$0xff] %vm3067, %v3016
  %3146 = vst.msk [vmem:[%s4 + $0x270] sm:$0xff] %vm3067, %v3017
  %3147 = vst.msk [vmem:[%s4 + $0x278] sm:$0xff] %vm3067, %v3018
  %3148 = vst.msk [vmem:[%s4 + $0x280] sm:$0xff] %vm3067, %v3019
  %3149 = vst.msk [vmem:[%s4 + $0x288] sm:$0xff] %vm3067, %v3020
  %3150 = vst.msk [vmem:[%s4 + $0x290] sm:$0xff] %vm3067, %v3021
  %3151 = vst.msk [vmem:[%s4 + $0x298] sm:$0xff] %vm3067, %v3022
  %3152 = vst.msk [vmem:[%s4 + $0x2a0] sm:$0xff] %vm3067, %v3023
  %3153 = vst.msk [vmem:[%s4 + $0x2a8] sm:$0xff] %vm3067, %v3024
  %3154 = vst.msk [vmem:[%s4 + $0x2b0] sm:$0xff] %vm3067, %v3025
  %3155 = vst.msk [vmem:[%s4 + $0x2b8] sm:$0xff] %vm3067, %v3026
  %3156 = vst.msk [vmem:[%s4 + $0x2c0] sm:$0xff] %vm3067, %v3027
  %3157 = vst.msk [vmem:[%s4 + $0x2c8] sm:$0xff] %vm3067, %v3028
  %3158 = vst.msk [vmem:[%s4 + $0x2d0] sm:$0xff] %vm3067, %v3029
  %3159 = vst.msk [vmem:[%s4 + $0x2d8] sm:$0xff] %vm3067, %v3030
  %3160 = vst.msk [vmem:[%s4 + $0x2e0] sm:$0xff] %vm3067, %v3031
  %3161 = vst.msk [vmem:[%s4 + $0x2e8] sm:$0xff] %vm3067, %v3032
  %3162 = vst.msk [vmem:[%s4 + $0x2f0] sm:$0xff] %vm3067, %v3033
  %3163 = vst.msk [vmem:[%s4 + $0x2f8] sm:$0xff] %vm3067, %v3034
  %3164 = vst.msk [vmem:[%s4 + $0x300] sm:$0xff] %vm3067, %v3035
  %3165 = vst.msk [vmem:[%s4 + $0x308] sm:$0xff] %vm3067, %v3036
  %3166 = vst.msk [vmem:[%s4 + $0x310] sm:$0xff] %vm3067, %v3037
  %3167 = vst.msk [vmem:[%s4 + $0x318] sm:$0xff] %vm3067, %v3038
  %3168 = vst.msk [vmem:[%s4 + $0x320] sm:$0xff] %vm3067, %v3039
  %3169 = vst.msk [vmem:[%s4 + $0x328] sm:$0xff] %vm3067, %v3040
  %3170 = vst.msk [vmem:[%s4 + $0x330] sm:$0xff] %vm3067, %v3041
  %3171 = vst.msk [vmem:[%s4 + $0x338] sm:$0xff] %vm3067, %v3042
  %3172 = vst.msk [vmem:[%s4 + $0x340] sm:$0xff] %vm3067, %v3043
  %3173 = vst.msk [vmem:[%s4 + $0x348] sm:$0xff] %vm3067, %v3044
  %3174 = vst.msk [vmem:[%s4 + $0x350] sm:$0xff] %vm3067, %v3045
  %3175 = vst.msk [vmem:[%s4 + $0x358] sm:$0xff] %vm3067, %v3046
  %3176 = vst.msk [vmem:[%s4 + $0x360] sm:$0xff] %vm3067, %v3047
  %3177 = vst.msk [vmem:[%s4 + $0x368] sm:$0xff] %vm3067, %v3048
  %3178 = vst.msk [vmem:[%s4 + $0x370] sm:$0xff] %vm3067, %v3049
  %3179 = vst.msk [vmem:[%s4 + $0x378] sm:$0xff] %vm3067, %v3050
  %3180 = vst.msk [vmem:[%s4 + $0x380] sm:$0xff] %vm3067, %v3051
  %3181 = vst.msk [vmem:[%s4 + $0x388] sm:$0xff] %vm3067, %v3052
  %3182 = vst.msk [vmem:[%s4 + $0x390] sm:$0xff] %vm3067, %v3053
  %3183 = vst.msk [vmem:[%s4 + $0x398] sm:$0xff] %vm3067, %v3054
  %3184 = vst.msk [vmem:[%s4 + $0x3a0] sm:$0xff] %vm3067, %v3055
  %3185 = vst.msk [vmem:[%s4 + $0x3a8] sm:$0xff] %vm3067, %v3056
  %3186 = vst.msk [vmem:[%s4 + $0x3b0] sm:$0xff] %vm3067, %v3057
  %3187 = vst.msk [vmem:[%s4 + $0x3b8] sm:$0xff] %vm3067, %v3058
  %3188 = vst.msk [vmem:[%s4 + $0x3c0] sm:$0xff] %vm3067, %v3059
  %3189 = vst.msk [vmem:[%s4 + $0x3c8] sm:$0xff] %vm3067, %v3060
  %3190 = vst.msk [vmem:[%s4 + $0x3d0] sm:$0xff] %vm3067, %v3061
  %3191 = vst.msk [vmem:[%s4 + $0x3d8] sm:$0xff] %vm3067, %v3062
  %3192 = vst.msk [vmem:[%s4 + $0x3e0] sm:$0xff] %vm3067, %v3063
  %3193 = vst.msk [vmem:[%s4 + $0x3e8] sm:$0xff] %vm3067, %v3064
  %3194 = vst.msk [vmem:[%s4 + $0x3f0] sm:$0xff] %vm3067, %v3065
  %3195 = vst.msk [vmem:[%s4 + $0x3f8] sm:$0xff] %vm3067, %v3066
  // Predicated region
  $region18: #{tpu_custom_call.1} parent=0 // pred_check
    _
  $region19: #{tpu_custom_call.1} parent=0 // pred_check_branch
    %3197 = sbr.rel (0) target = $region21
  $region20: #{tpu_custom_call.1} parent=0 // pred_region
    _
  $region21: #{tpu_custom_call.1} parent=0 // pred_fallthru
    _
  // Predicated region
  $region22: #{tpu_custom_call.1} parent=0 // pred_check
    _
  $region23: #{tpu_custom_call.1} parent=0 // pred_check_branch
    %3199 = sbr.rel (0) target = $region25
  $region24: #{tpu_custom_call.1} parent=0 // pred_region
    _
  $region25: #{tpu_custom_call.1} parent=0 // pred_fallthru
    _

</llo_original>
